<compile_context>
chip_gen: v7x
topology: tpu7x:2x2x1
jax: 0.10.0
libtpu: 0.0.40
codegen_flags: <defaults>
</compile_context>

<pallas_src>
import functools

import jax
import jax.numpy as jnp
from jax.experimental import pallas as pl
from jax.experimental.pallas import tpu as pltpu


N_EXP = 3
N_TASK = 2


# ----------------------------- Pallas kernel ---------------------------------
def _ammoe_kernel(x_ref, wih_ref, whh_ref, b_ref, tw_ref, tb_ref, out_ref, *,
                  B, T, HEp, GL0):
    """Fused aMMOE forward: both tasks, all 3 experts, full recurrence.

    x_ref   : (T*2B, D)      time-major; within each time block rows [0:B] are
                             task 0, rows [B:2B] are task 1
    wih_ref : (D, 4*HEp)     fused input projection, gate-major [i|f|o|g],
                             i/f/o columns pre-scaled by 0.5 (sigmoid-as-tanh);
                             the 2 gate-logit columns ride the g-group padding
    whh_ref : (HEp, 4*HEp)   block-diagonal recurrent weights (same layout,
                             padded rows/cols exactly zero)
    b_ref   : (1, 4*HEp)     combined b_ih + b_hh in the fused layout
    tw_ref  : (HEp, 2*O)     [tower0 | tower1], tiled over experts (folds the
                             expert sum), padded rows zero
    tb_ref  : (2, O)         tower biases
    out_ref : (2B, O)
    """
    BB = 2 * B
    O = out_ref.shape[1]
    H3 = 3 * HEp

    # One fused MXU matmul: input projection for all experts / gates / timesteps,
    # with both tasks' gate logits riding zero-padded columns of the g group.
    xg = (jnp.dot(x_ref[...], wih_ref[...], preferred_element_type=jnp.float32)
          + b_ref[...])                                              # (T*BB, 4*HEp)

    # ---- per-task gate logits -> softmax over time (once, off the recurrence path) ----
    glog = xg[:, GL0:GL0 + N_TASK]                                   # (T*BB, 2)
    row = jax.lax.broadcasted_iota(jnp.int32, (T * BB, 1), 0)
    is_t1 = (row % BB) >= B
    logits = jnp.where(is_t1, glog[:, 1:2], glog[:, 0:1])            # (T*BB, 1)
    lsl = [logits[t * BB:(t + 1) * BB, :] for t in range(T)]         # static sublane-block slices
    m = lsl[0]
    for t in range(1, T):
        m = jnp.maximum(m, lsl[t])
    es = [jnp.exp(l - m) for l in lsl]
    denom = es[0]
    for t in range(1, T):
        denom = denom + es[t]
    inv = 1.0 / denom
    # Per-step gate weight, pre-broadcast to full lane width (hoisted out of the loop).
    gate_b = [jnp.broadcast_to(e * inv, (BB, HEp)) for e in es]

    whh = whh_ref[...]                                               # (HEp, 4*HEp)
    h = jnp.zeros((BB, HEp), jnp.float32)
    c = jnp.zeros((BB, HEp), jnp.float32)
    acc = jnp.zeros((BB, HEp), jnp.float32)

    # Serial recurrence: one (BB,HEp)@(HEp,4*HEp) MXU matmul + one full-slab
    # tanh per step.  All slice boundaries are exact 128-lane tiles.
    # TODO(synk): if the Mosaic dump shows whh being re-staged every step,
    # drive the MXU explicitly (pltpu.matmul_push_rhs once + matmul_acc_lhs per
    # step) to keep the recurrent weights resident across the unrolled loop.
    for t in range(T):
        pre = xg[t * BB:(t + 1) * BB, :] + jnp.dot(
            h, whh, preferred_element_type=jnp.float32)              # (BB, 4*HEp)
        th = jnp.tanh(pre)                  # single EUP pass over the whole slab
        sg = 0.5 * th[:, :H3] + 0.5         # i|f|o via sigmoid(x) = 0.5*(1 + tanh(x/2))
        gg = th[:, H3:]                     # g (padded lanes carry junk but stay isolated)
        c = sg[:, HEp:2 * HEp] * c + sg[:, :HEp] * gg
        h = sg[:, 2 * HEp:H3] * jnp.tanh(c)
        acc = acc + gate_b[t] * h           # gate-weighted sum over time

    # Expert-sum + both towers folded into a single (HEp, 2O) matmul.
    # TODO(synk): nn.Dropout in the towers is identity (inference only).
    out2 = jnp.dot(acc, tw_ref[...], preferred_element_type=jnp.float32)   # (BB, 2O)
    tb = tb_ref[...]
    is_task1 = jax.lax.broadcasted_iota(jnp.int32, (BB, O), 0) >= B
    out_ref[...] = jnp.where(is_task1, out2[:, O:] + tb[1:2, :], out2[:, :O] + tb[0:1, :])


def _ammoe_call(x_tm, wih_f, whh_bd, b_f, tw_full, tb_cat, *, B, T, HEp, GL0):
    BB = 2 * B
    O = tb_cat.shape[1]
    vmem = lambda: pl.BlockSpec(memory_space=pltpu.MemorySpace.VMEM)
    # Gridless single invocation on purpose: total resident footprint is <0.5 MiB
    # f32 (x 4KB, wih 64KB, whh 256KB, towers/gates <5KB), far below even v7x's
    # 64 MiB VMEM.  For realistic batch sizes add a leading grid over 2B with
    # dimension_semantics=("parallel",) so v7x's second TensorCore is used.
    return pl.pallas_call(
        functools.partial(_ammoe_kernel, B=B, T=T, HEp=HEp, GL0=GL0),
        out_shape=jax.ShapeDtypeStruct((BB, O), jnp.float32),
        in_specs=[vmem() for _ in range(6)],
        out_specs=vmem(),
    )(x_tm, wih_f, whh_bd, b_f, tw_full, tb_cat)


# --------------------- host-side weight fusion / re-layout -------------------
def _fuse_params(params):
    """Build fused kernel operands from per-expert / per-task PyTorch-style weights.

    Done ONCE at parameter-load time (hoisted out of the per-call path).

    params:
      wih (E, D, 4H)  = W_ih^T per expert, PyTorch gate order [i|f|g|o]
      whh (E, H, 4H)  = W_hh^T per expert, same order
      b   (E, 1, 4H)  = b_ih + b_hh
      gw  (2, 1, D), gb (2, 1, 1)    gate Linear(D, 1)
      tw  (2, H, O),  tb (2, 1, O)   tower Linear(H, O) (pre-transposed)
    """
    wih, whh, b = params["wih"], params["whh"], params["b"]
    gw, gb = params["gw"], params["gb"]
    tw, tb = params["tw"], params["tb"]
    E, D, H4 = wih.shape
    H = H4 // 4
    HE = E * H
    O = tw.shape[2]
    # Pad the fused hidden width to a 128-lane multiple (with room for the
    # N_TASK gate-logit columns in the g-group padding).
    HEp = ((HE + N_TASK + 127) // 128) * 128
    assert HEp >= HE + N_TASK

    src = {"i": 0, "f": 1, "g": 2, "o": 3}          # PyTorch per-expert gate order
    groups = ["i", "f", "o", "g"]                   # fused gate-major layout
    scale = {"i": 0.5, "f": 0.5, "o": 0.5, "g": 1.0}  # sigmoid(x)=0.5*(1+tanh(0.5 x))

    wih_f = jnp.zeros((D, 4 * HEp), jnp.float32)
    b_f = jnp.zeros((1, 4 * HEp), jnp.float32)
    whh_bd = jnp.zeros((HEp, 4 * HEp), jnp.float32)
    for gi, gname in enumerate(groups):
        s = src[gname] * H
        sc = scale[gname]
        for ex in range(E):
            c0 = gi * HEp + ex * H
            wih_f = wih_f.at[:, c0:c0 + H].set(sc * wih[ex][:, s:s + H])
            b_f = b_f.at[:, c0:c0 + H].set(sc * b[ex][:, s:s + H])
            whh_bd = whh_bd.at[ex * H:(ex + 1) * H, c0:c0 + H].set(sc * whh[ex][:, s:s + H])

    # Gate-logit fusion: ride the zero padding of the g (tanh) group; unscaled.
    GL0 = 3 * HEp + HE
    for j in range(N_TASK):
        wih_f = wih_f.at[:, GL0 + j].set(gw[j][0, :])
        b_f = b_f.at[:, GL0 + j].set(gb[j][0, 0])

    tw_cat = jnp.concatenate([tw[j] for j in range(N_TASK)], axis=1)     # (H, 2O)
    tw_full = jnp.zeros((HEp, 2 * O), jnp.float32)
    for ex in range(E):
        tw_full = tw_full.at[ex * H:(ex + 1) * H, :].set(tw_cat)         # folds expert sum
    tb_cat = jnp.concatenate([tb[j] for j in range(N_TASK)], axis=0)     # (2, O)

    return dict(wih_f=wih_f, whh_bd=whh_bd, b_f=b_f, tw_full=tw_full, tb_cat=tb_cat,
                HEp=HEp, GL0=GL0)


# ------------------------------- jitted forward -------------------------------
@functools.partial(jax.jit, static_argnames=("B", "T", "HEp", "GL0"))
def _forward_impl(x0, x1, wih_f, whh_bd, b_f, tw_full, tb_cat, *, B, T, HEp, GL0):
    x_all = jnp.concatenate([x0, x1], axis=0).astype(jnp.float32)          # (2B, T, D)
    x_tm = jnp.transpose(x_all, (1, 0, 2)).reshape(T * 2 * B, x_all.shape[-1])  # time-major
    return _ammoe_call(x_tm, wih_f, whh_bd, b_f, tw_full, tb_cat,
                       B=B, T=T, HEp=HEp, GL0=GL0)


def ammoe_forward(inputs_list, fused):
    """Mirrors aMMOE.forward: list of 2 task inputs (B,T,D) -> list of 2 outputs (B,1,O)."""
    assert len(inputs_list) == N_TASK
    B, T, _ = inputs_list[0].shape
    out = _forward_impl(inputs_list[0], inputs_list[1],
                        fused["wih_f"], fused["whh_bd"], fused["b_f"],
                        fused["tw_full"], fused["tb_cat"],
                        B=B, T=T, HEp=fused["HEp"], GL0=fused["GL0"])
    return [out[j * B:(j + 1) * B, None, :] for j in range(N_TASK)]


# ------------------------- pure-JAX reference (for checking) -----------------
def _lstm_ref(x, wih_t, whh_t, b):
    B, T, D = x.shape
    H = whh_t.shape[0]
    h = jnp.zeros((B, H), jnp.float32)
    c = jnp.zeros((B, H), jnp.float32)
    outs = []
    for t in range(T):
        g = x[:, t] @ wih_t + h @ whh_t + b[0]
        i = jax.nn.sigmoid(g[:, :H])
        f = jax.nn.sigmoid(g[:, H:2 * H])
        gg = jnp.tanh(g[:, 2 * H:3 * H])
        o = jax.nn.sigmoid(g[:, 3 * H:])
        c = f * c + i * gg
        h = o * jnp.tanh(c)
        outs.append(h)
    return jnp.stack(outs, axis=1)                         # (B, T, H)


def _ref_task(x, wih, whh, b, gw, gb, tw, tb):
    logits = jnp.einsum("btd,d->bt", x, gw[0]) + gb[0, 0]
    gate = jax.nn.softmax(logits, axis=1)
    combined = 0.0
    for e in range(wih.shape[0]):
        ho = _lstm_ref(x, wih[e], whh[e], b[e])
        combined = combined + jnp.einsum("bt,bth->bh", gate, ho)
    out = combined @ tw + tb
    return out[:, None, :]


# --------------------------------- main ---------------------------------------
if __name__ == "__main__":
    B, T = 2, 8                 # batch, sequence length
    D, H, O = 32, 32, 4         # input_size, hidden_size, out_size

    key = jax.random.PRNGKey(0)
    ks = jax.random.split(key, 12)
    init = lambda k, shape, s=0.1: (s * jax.random.normal(k, shape)).astype(jnp.float32)

    params = {
        # LSTM weights, pre-transposed: W_ih^T -> (D, 4H), W_hh^T -> (H, 4H)
        "wih": init(ks[0], (N_EXP, D, 4 * H)),
        "whh": init(ks[1], (N_EXP, H, 4 * H)),
        "b":   init(ks[2], (N_EXP, 1, 4 * H)),   # b_ih + b_hh combined
        # gates: Linear(D, 1)
        "gw":  init(ks[3], (N_TASK, 1, D)),
        "gb":  init(ks[4], (N_TASK, 1, 1)),
        # towers: Linear(H, O), pre-transposed -> (H, O)
        "tw":  init(ks[5], (N_TASK, H, O)),
        "tb":  init(ks[6], (N_TASK, 1, O)),
    }

    inputs_list = [init(ks[7], (B, T, D), 1.0), init(ks[8], (B, T, D), 1.0)]

    fused = _fuse_params(params)            # weight fusion hoisted: done once
    outs = ammoe_forward(inputs_list, fused)
    outs = [jax.block_until_ready(o) for o in outs]

    # correctness check against a pure-JAX reference of the PyTorch semantics
    for j in range(N_TASK):
        ref = _ref_task(inputs_list[j],
                        params["wih"], params["whh"], params["b"],
                        params["gw"][j], params["gb"][j],
                        params["tw"][j], params["tb"][j])
        assert outs[j].shape == (B, 1, O)
        assert jnp.allclose(outs[j], ref, atol=1e-3, rtol=1e-3)

    print("KERNEL_OK")
</pallas_src>

<mosaic_0001>
module attributes {stable_mosaic.version = 11 : i64} {
  func.func @_ammoe_kernel(%arg0: memref<32x32xf32, #tpu.memory_space<vmem>>, %arg1: memref<32x512xf32, #tpu.memory_space<vmem>>, %arg2: memref<128x512xf32, #tpu.memory_space<vmem>>, %arg3: memref<1x512xf32, #tpu.memory_space<vmem>>, %arg4: memref<128x8xf32, #tpu.memory_space<vmem>>, %arg5: memref<2x4xf32, #tpu.memory_space<vmem>>, %arg6: memref<4x4xf32, #tpu.memory_space<vmem>>) attributes {dimension_semantics = [], scalar_prefetch = 0 : i64, scratch_operands = 0 : i64, tpu.core_type = #tpu.core_type<tc>} {
    %c0 = arith.constant 0 : index
    %c0_0 = arith.constant 0 : index
    %0 = vector.load %arg0[%c0, %c0_0] : memref<32x32xf32, #tpu.memory_space<vmem>>, vector<32x32xf32>
    %c0_1 = arith.constant 0 : index
    %c0_2 = arith.constant 0 : index
    %1 = vector.load %arg1[%c0_1, %c0_2] : memref<32x512xf32, #tpu.memory_space<vmem>>, vector<32x512xf32>
    %cst = arith.constant dense<0.000000e+00> : vector<32x512xf32>
    %2 = tpu.matmul %0, %1, %cst {dimension_numbers = #tpu.dot_dimension_numbers<[1], [0], [0], [1], [0, 0, 1, 1], [], []>} : vector<32x32xf32>, vector<32x512xf32>, vector<32x512xf32> -> vector<32x512xf32>
    %c0_3 = arith.constant 0 : index
    %c0_4 = arith.constant 0 : index
    %3 = vector.load %arg3[%c0_3, %c0_4] : memref<1x512xf32, #tpu.memory_space<vmem>>, vector<1x512xf32>
    %4 = vector.broadcast %3 : vector<1x512xf32> to vector<32x512xf32>
    %5 = arith.addf %2, %4 : vector<32x512xf32>
    %6 = vector.extract_strided_slice %5 {offsets = [0, 480], sizes = [32, 2], strides = [1, 1]} : vector<32x512xf32> to vector<32x2xf32>
    %7 = tpu.iota {dimensions = array<i32: 0>} : vector<32x1xi32>
    %c4_i32 = arith.constant 4 : i32
    %c0_i32 = arith.constant 0 : i32
    %8 = arith.cmpi eq, %c4_i32, %c0_i32 : i32
    %c1_i32 = arith.constant 1 : i32
    %9 = arith.select %8, %c1_i32, %c4_i32 : i32
    %10 = vector.broadcast %9 : i32 to vector<32x1xi32>
    %11 = arith.remsi %7, %10 : vector<32x1xi32>
    %c0_i32_5 = arith.constant 0 : i32
    %12 = vector.broadcast %c0_i32_5 : i32 to vector<32x1xi32>
    %13 = arith.cmpi ne, %11, %12 : vector<32x1xi32>
    %c0_i32_6 = arith.constant 0 : i32
    %14 = vector.broadcast %c0_i32_6 : i32 to vector<32x1xi32>
    %15 = arith.cmpi slt, %11, %14 : vector<32x1xi32>
    %c0_i32_7 = arith.constant 0 : i32
    %16 = arith.cmpi slt, %9, %c0_i32_7 : i32
    %17 = vector.broadcast %16 : i1 to vector<32x1xi1>
    %18 = vector.broadcast %17 : vector<32x1xi1> to vector<32x1xi1>
    %19 = arith.xori %15, %18 : vector<32x1xi1>
    %20 = arith.andi %19, %13 : vector<32x1xi1>
    %21 = vector.broadcast %9 : i32 to vector<32x1xi32>
    %22 = arith.addi %11, %21 : vector<32x1xi32>
    %23 = arith.select %20, %22, %11 : vector<32x1xi1>, vector<32x1xi32>
    %c2_i32 = arith.constant 2 : i32
    %24 = vector.broadcast %c2_i32 : i32 to vector<32x1xi32>
    %25 = arith.cmpi sge, %23, %24 : vector<32x1xi32>
    %26 = vector.extract_strided_slice %6 {offsets = [0, 1], sizes = [32, 1], strides = [1, 1]} : vector<32x2xf32> to vector<32x1xf32>
    %27 = vector.extract_strided_slice %6 {offsets = [0, 0], sizes = [32, 1], strides = [1, 1]} : vector<32x2xf32> to vector<32x1xf32>
    %28 = arith.select %25, %26, %27 : vector<32x1xi1>, vector<32x1xf32>
    %29 = vector.extract_strided_slice %28 {offsets = [0, 0], sizes = [4, 1], strides = [1, 1]} : vector<32x1xf32> to vector<4x1xf32>
    %30 = vector.extract_strided_slice %28 {offsets = [4, 0], sizes = [4, 1], strides = [1, 1]} : vector<32x1xf32> to vector<4x1xf32>
    %31 = vector.extract_strided_slice %28 {offsets = [8, 0], sizes = [4, 1], strides = [1, 1]} : vector<32x1xf32> to vector<4x1xf32>
    %32 = vector.extract_strided_slice %28 {offsets = [12, 0], sizes = [4, 1], strides = [1, 1]} : vector<32x1xf32> to vector<4x1xf32>
    %33 = vector.extract_strided_slice %28 {offsets = [16, 0], sizes = [4, 1], strides = [1, 1]} : vector<32x1xf32> to vector<4x1xf32>
    %34 = vector.extract_strided_slice %28 {offsets = [20, 0], sizes = [4, 1], strides = [1, 1]} : vector<32x1xf32> to vector<4x1xf32>
    %35 = vector.extract_strided_slice %28 {offsets = [24, 0], sizes = [4, 1], strides = [1, 1]} : vector<32x1xf32> to vector<4x1xf32>
    %36 = vector.extract_strided_slice %28 {offsets = [28, 0], sizes = [4, 1], strides = [1, 1]} : vector<32x1xf32> to vector<4x1xf32>
    %37 = arith.maximumf %29, %30 : vector<4x1xf32>
    %38 = arith.maximumf %37, %31 : vector<4x1xf32>
    %39 = arith.maximumf %38, %32 : vector<4x1xf32>
    %40 = arith.maximumf %39, %33 : vector<4x1xf32>
    %41 = arith.maximumf %40, %34 : vector<4x1xf32>
    %42 = arith.maximumf %41, %35 : vector<4x1xf32>
    %43 = arith.maximumf %42, %36 : vector<4x1xf32>
    %44 = arith.subf %29, %43 : vector<4x1xf32>
    %45 = math.exp %44 : vector<4x1xf32>
    %46 = arith.subf %30, %43 : vector<4x1xf32>
    %47 = math.exp %46 : vector<4x1xf32>
    %48 = arith.subf %31, %43 : vector<4x1xf32>
    %49 = math.exp %48 : vector<4x1xf32>
    %50 = arith.subf %32, %43 : vector<4x1xf32>
    %51 = math.exp %50 : vector<4x1xf32>
    %52 = arith.subf %33, %43 : vector<4x1xf32>
    %53 = math.exp %52 : vector<4x1xf32>
    %54 = arith.subf %34, %43 : vector<4x1xf32>
    %55 = math.exp %54 : vector<4x1xf32>
    %56 = arith.subf %35, %43 : vector<4x1xf32>
    %57 = math.exp %56 : vector<4x1xf32>
    %58 = arith.subf %36, %43 : vector<4x1xf32>
    %59 = math.exp %58 : vector<4x1xf32>
    %60 = arith.addf %45, %47 : vector<4x1xf32>
    %61 = arith.addf %60, %49 : vector<4x1xf32>
    %62 = arith.addf %61, %51 : vector<4x1xf32>
    %63 = arith.addf %62, %53 : vector<4x1xf32>
    %64 = arith.addf %63, %55 : vector<4x1xf32>
    %65 = arith.addf %64, %57 : vector<4x1xf32>
    %66 = arith.addf %65, %59 : vector<4x1xf32>
    %cst_8 = arith.constant 1.000000e+00 : f32
    %67 = vector.broadcast %cst_8 : f32 to vector<4x1xf32>
    %68 = arith.divf %67, %66 : vector<4x1xf32>
    %69 = arith.mulf %45, %68 : vector<4x1xf32>
    %70 = vector.shape_cast %69 : vector<4x1xf32> to vector<4x1xf32>
    %71 = vector.broadcast %70 : vector<4x1xf32> to vector<4x128xf32>
    %72 = arith.mulf %47, %68 : vector<4x1xf32>
    %73 = vector.shape_cast %72 : vector<4x1xf32> to vector<4x1xf32>
    %74 = vector.broadcast %73 : vector<4x1xf32> to vector<4x128xf32>
    %75 = arith.mulf %49, %68 : vector<4x1xf32>
    %76 = vector.shape_cast %75 : vector<4x1xf32> to vector<4x1xf32>
    %77 = vector.broadcast %76 : vector<4x1xf32> to vector<4x128xf32>
    %78 = arith.mulf %51, %68 : vector<4x1xf32>
    %79 = vector.shape_cast %78 : vector<4x1xf32> to vector<4x1xf32>
    %80 = vector.broadcast %79 : vector<4x1xf32> to vector<4x128xf32>
    %81 = arith.mulf %53, %68 : vector<4x1xf32>
    %82 = vector.shape_cast %81 : vector<4x1xf32> to vector<4x1xf32>
    %83 = vector.broadcast %82 : vector<4x1xf32> to vector<4x128xf32>
    %84 = arith.mulf %55, %68 : vector<4x1xf32>
    %85 = vector.shape_cast %84 : vector<4x1xf32> to vector<4x1xf32>
    %86 = vector.broadcast %85 : vector<4x1xf32> to vector<4x128xf32>
    %87 = arith.mulf %57, %68 : vector<4x1xf32>
    %88 = vector.shape_cast %87 : vector<4x1xf32> to vector<4x1xf32>
    %89 = vector.broadcast %88 : vector<4x1xf32> to vector<4x128xf32>
    %90 = arith.mulf %59, %68 : vector<4x1xf32>
    %91 = vector.shape_cast %90 : vector<4x1xf32> to vector<4x1xf32>
    %92 = vector.broadcast %91 : vector<4x1xf32> to vector<4x128xf32>
    %c0_9 = arith.constant 0 : index
    %c0_10 = arith.constant 0 : index
    %93 = vector.load %arg2[%c0_9, %c0_10] : memref<128x512xf32, #tpu.memory_space<vmem>>, vector<128x512xf32>
    %cst_11 = arith.constant 0.000000e+00 : f32
    %94 = vector.broadcast %cst_11 : f32 to vector<4x128xf32>
    %cst_12 = arith.constant 0.000000e+00 : f32
    %95 = vector.broadcast %cst_12 : f32 to vector<4x128xf32>
    %cst_13 = arith.constant 0.000000e+00 : f32
    %96 = vector.broadcast %cst_13 : f32 to vector<4x128xf32>
    %97 = vector.extract_strided_slice %5 {offsets = [0, 0], sizes = [4, 512], strides = [1, 1]} : vector<32x512xf32> to vector<4x512xf32>
    %cst_14 = arith.constant dense<0.000000e+00> : vector<4x512xf32>
    %98 = tpu.matmul %94, %93, %cst_14 {dimension_numbers = #tpu.dot_dimension_numbers<[1], [0], [0], [1], [0, 0, 1, 1], [], []>} : vector<4x128xf32>, vector<128x512xf32>, vector<4x512xf32> -> vector<4x512xf32>
    %99 = arith.addf %97, %98 : vector<4x512xf32>
    %100 = math.tanh %99 : vector<4x512xf32>
    %101 = vector.extract_strided_slice %100 {offsets = [0, 0], sizes = [4, 384], strides = [1, 1]} : vector<4x512xf32> to vector<4x384xf32>
    %cst_15 = arith.constant 5.000000e-01 : f32
    %102 = vector.broadcast %cst_15 : f32 to vector<4x384xf32>
    %103 = arith.mulf %102, %101 : vector<4x384xf32>
    %cst_16 = arith.constant 5.000000e-01 : f32
    %104 = vector.broadcast %cst_16 : f32 to vector<4x384xf32>
    %105 = arith.addf %103, %104 : vector<4x384xf32>
    %106 = vector.extract_strided_slice %100 {offsets = [0, 384], sizes = [4, 128], strides = [1, 1]} : vector<4x512xf32> to vector<4x128xf32>
    %107 = vector.extract_strided_slice %105 {offsets = [0, 128], sizes = [4, 128], strides = [1, 1]} : vector<4x384xf32> to vector<4x128xf32>
    %108 = arith.mulf %107, %95 : vector<4x128xf32>
    %109 = vector.extract_strided_slice %105 {offsets = [0, 0], sizes = [4, 128], strides = [1, 1]} : vector<4x384xf32> to vector<4x128xf32>
    %110 = arith.mulf %109, %106 : vector<4x128xf32>
    %111 = arith.addf %108, %110 : vector<4x128xf32>
    %112 = vector.extract_strided_slice %105 {offsets = [0, 256], sizes = [4, 128], strides = [1, 1]} : vector<4x384xf32> to vector<4x128xf32>
    %113 = math.tanh %111 : vector<4x128xf32>
    %114 = arith.mulf %112, %113 : vector<4x128xf32>
    %115 = arith.mulf %71, %114 : vector<4x128xf32>
    %116 = arith.addf %96, %115 : vector<4x128xf32>
    %117 = vector.extract_strided_slice %5 {offsets = [4, 0], sizes = [4, 512], strides = [1, 1]} : vector<32x512xf32> to vector<4x512xf32>
    %cst_17 = arith.constant dense<0.000000e+00> : vector<4x512xf32>
    %118 = tpu.matmul %114, %93, %cst_17 {dimension_numbers = #tpu.dot_dimension_numbers<[1], [0], [0], [1], [0, 0, 1, 1], [], []>} : vector<4x128xf32>, vector<128x512xf32>, vector<4x512xf32> -> vector<4x512xf32>
    %119 = arith.addf %117, %118 : vector<4x512xf32>
    %120 = math.tanh %119 : vector<4x512xf32>
    %121 = vector.extract_strided_slice %120 {offsets = [0, 0], sizes = [4, 384], strides = [1, 1]} : vector<4x512xf32> to vector<4x384xf32>
    %cst_18 = arith.constant 5.000000e-01 : f32
    %122 = vector.broadcast %cst_18 : f32 to vector<4x384xf32>
    %123 = arith.mulf %122, %121 : vector<4x384xf32>
    %cst_19 = arith.constant 5.000000e-01 : f32
    %124 = vector.broadcast %cst_19 : f32 to vector<4x384xf32>
    %125 = arith.addf %123, %124 : vector<4x384xf32>
    %126 = vector.extract_strided_slice %120 {offsets = [0, 384], sizes = [4, 128], strides = [1, 1]} : vector<4x512xf32> to vector<4x128xf32>
    %127 = vector.extract_strided_slice %125 {offsets = [0, 128], sizes = [4, 128], strides = [1, 1]} : vector<4x384xf32> to vector<4x128xf32>
    %128 = arith.mulf %127, %111 : vector<4x128xf32>
    %129 = vector.extract_strided_slice %125 {offsets = [0, 0], sizes = [4, 128], strides = [1, 1]} : vector<4x384xf32> to vector<4x128xf32>
    %130 = arith.mulf %129, %126 : vector<4x128xf32>
    %131 = arith.addf %128, %130 : vector<4x128xf32>
    %132 = vector.extract_strided_slice %125 {offsets = [0, 256], sizes = [4, 128], strides = [1, 1]} : vector<4x384xf32> to vector<4x128xf32>
    %133 = math.tanh %131 : vector<4x128xf32>
    %134 = arith.mulf %132, %133 : vector<4x128xf32>
    %135 = arith.mulf %74, %134 : vector<4x128xf32>
    %136 = arith.addf %116, %135 : vector<4x128xf32>
    %137 = vector.extract_strided_slice %5 {offsets = [8, 0], sizes = [4, 512], strides = [1, 1]} : vector<32x512xf32> to vector<4x512xf32>
    %cst_20 = arith.constant dense<0.000000e+00> : vector<4x512xf32>
    %138 = tpu.matmul %134, %93, %cst_20 {dimension_numbers = #tpu.dot_dimension_numbers<[1], [0], [0], [1], [0, 0, 1, 1], [], []>} : vector<4x128xf32>, vector<128x512xf32>, vector<4x512xf32> -> vector<4x512xf32>
    %139 = arith.addf %137, %138 : vector<4x512xf32>
    %140 = math.tanh %139 : vector<4x512xf32>
    %141 = vector.extract_strided_slice %140 {offsets = [0, 0], sizes = [4, 384], strides = [1, 1]} : vector<4x512xf32> to vector<4x384xf32>
    %cst_21 = arith.constant 5.000000e-01 : f32
    %142 = vector.broadcast %cst_21 : f32 to vector<4x384xf32>
    %143 = arith.mulf %142, %141 : vector<4x384xf32>
    %cst_22 = arith.constant 5.000000e-01 : f32
    %144 = vector.broadcast %cst_22 : f32 to vector<4x384xf32>
    %145 = arith.addf %143, %144 : vector<4x384xf32>
    %146 = vector.extract_strided_slice %140 {offsets = [0, 384], sizes = [4, 128], strides = [1, 1]} : vector<4x512xf32> to vector<4x128xf32>
    %147 = vector.extract_strided_slice %145 {offsets = [0, 128], sizes = [4, 128], strides = [1, 1]} : vector<4x384xf32> to vector<4x128xf32>
    %148 = arith.mulf %147, %131 : vector<4x128xf32>
    %149 = vector.extract_strided_slice %145 {offsets = [0, 0], sizes = [4, 128], strides = [1, 1]} : vector<4x384xf32> to vector<4x128xf32>
    %150 = arith.mulf %149, %146 : vector<4x128xf32>
    %151 = arith.addf %148, %150 : vector<4x128xf32>
    %152 = vector.extract_strided_slice %145 {offsets = [0, 256], sizes = [4, 128], strides = [1, 1]} : vector<4x384xf32> to vector<4x128xf32>
    %153 = math.tanh %151 : vector<4x128xf32>
    %154 = arith.mulf %152, %153 : vector<4x128xf32>
    %155 = arith.mulf %77, %154 : vector<4x128xf32>
    %156 = arith.addf %136, %155 : vector<4x128xf32>
    %157 = vector.extract_strided_slice %5 {offsets = [12, 0], sizes = [4, 512], strides = [1, 1]} : vector<32x512xf32> to vector<4x512xf32>
    %cst_23 = arith.constant dense<0.000000e+00> : vector<4x512xf32>
    %158 = tpu.matmul %154, %93, %cst_23 {dimension_numbers = #tpu.dot_dimension_numbers<[1], [0], [0], [1], [0, 0, 1, 1], [], []>} : vector<4x128xf32>, vector<128x512xf32>, vector<4x512xf32> -> vector<4x512xf32>
    %159 = arith.addf %157, %158 : vector<4x512xf32>
    %160 = math.tanh %159 : vector<4x512xf32>
    %161 = vector.extract_strided_slice %160 {offsets = [0, 0], sizes = [4, 384], strides = [1, 1]} : vector<4x512xf32> to vector<4x384xf32>
    %cst_24 = arith.constant 5.000000e-01 : f32
    %162 = vector.broadcast %cst_24 : f32 to vector<4x384xf32>
    %163 = arith.mulf %162, %161 : vector<4x384xf32>
    %cst_25 = arith.constant 5.000000e-01 : f32
    %164 = vector.broadcast %cst_25 : f32 to vector<4x384xf32>
    %165 = arith.addf %163, %164 : vector<4x384xf32>
    %166 = vector.extract_strided_slice %160 {offsets = [0, 384], sizes = [4, 128], strides = [1, 1]} : vector<4x512xf32> to vector<4x128xf32>
    %167 = vector.extract_strided_slice %165 {offsets = [0, 128], sizes = [4, 128], strides = [1, 1]} : vector<4x384xf32> to vector<4x128xf32>
    %168 = arith.mulf %167, %151 : vector<4x128xf32>
    %169 = vector.extract_strided_slice %165 {offsets = [0, 0], sizes = [4, 128], strides = [1, 1]} : vector<4x384xf32> to vector<4x128xf32>
    %170 = arith.mulf %169, %166 : vector<4x128xf32>
    %171 = arith.addf %168, %170 : vector<4x128xf32>
    %172 = vector.extract_strided_slice %165 {offsets = [0, 256], sizes = [4, 128], strides = [1, 1]} : vector<4x384xf32> to vector<4x128xf32>
    %173 = math.tanh %171 : vector<4x128xf32>
    %174 = arith.mulf %172, %173 : vector<4x128xf32>
    %175 = arith.mulf %80, %174 : vector<4x128xf32>
    %176 = arith.addf %156, %175 : vector<4x128xf32>
    %177 = vector.extract_strided_slice %5 {offsets = [16, 0], sizes = [4, 512], strides = [1, 1]} : vector<32x512xf32> to vector<4x512xf32>
    %cst_26 = arith.constant dense<0.000000e+00> : vector<4x512xf32>
    %178 = tpu.matmul %174, %93, %cst_26 {dimension_numbers = #tpu.dot_dimension_numbers<[1], [0], [0], [1], [0, 0, 1, 1], [], []>} : vector<4x128xf32>, vector<128x512xf32>, vector<4x512xf32> -> vector<4x512xf32>
    %179 = arith.addf %177, %178 : vector<4x512xf32>
    %180 = math.tanh %179 : vector<4x512xf32>
    %181 = vector.extract_strided_slice %180 {offsets = [0, 0], sizes = [4, 384], strides = [1, 1]} : vector<4x512xf32> to vector<4x384xf32>
    %cst_27 = arith.constant 5.000000e-01 : f32
    %182 = vector.broadcast %cst_27 : f32 to vector<4x384xf32>
    %183 = arith.mulf %182, %181 : vector<4x384xf32>
    %cst_28 = arith.constant 5.000000e-01 : f32
    %184 = vector.broadcast %cst_28 : f32 to vector<4x384xf32>
    %185 = arith.addf %183, %184 : vector<4x384xf32>
    %186 = vector.extract_strided_slice %180 {offsets = [0, 384], sizes = [4, 128], strides = [1, 1]} : vector<4x512xf32> to vector<4x128xf32>
    %187 = vector.extract_strided_slice %185 {offsets = [0, 128], sizes = [4, 128], strides = [1, 1]} : vector<4x384xf32> to vector<4x128xf32>
    %188 = arith.mulf %187, %171 : vector<4x128xf32>
    %189 = vector.extract_strided_slice %185 {offsets = [0, 0], sizes = [4, 128], strides = [1, 1]} : vector<4x384xf32> to vector<4x128xf32>
    %190 = arith.mulf %189, %186 : vector<4x128xf32>
    %191 = arith.addf %188, %190 : vector<4x128xf32>
    %192 = vector.extract_strided_slice %185 {offsets = [0, 256], sizes = [4, 128], strides = [1, 1]} : vector<4x384xf32> to vector<4x128xf32>
    %193 = math.tanh %191 : vector<4x128xf32>
    %194 = arith.mulf %192, %193 : vector<4x128xf32>
    %195 = arith.mulf %83, %194 : vector<4x128xf32>
    %196 = arith.addf %176, %195 : vector<4x128xf32>
    %197 = vector.extract_strided_slice %5 {offsets = [20, 0], sizes = [4, 512], strides = [1, 1]} : vector<32x512xf32> to vector<4x512xf32>
    %cst_29 = arith.constant dense<0.000000e+00> : vector<4x512xf32>
    %198 = tpu.matmul %194, %93, %cst_29 {dimension_numbers = #tpu.dot_dimension_numbers<[1], [0], [0], [1], [0, 0, 1, 1], [], []>} : vector<4x128xf32>, vector<128x512xf32>, vector<4x512xf32> -> vector<4x512xf32>
    %199 = arith.addf %197, %198 : vector<4x512xf32>
    %200 = math.tanh %199 : vector<4x512xf32>
    %201 = vector.extract_strided_slice %200 {offsets = [0, 0], sizes = [4, 384], strides = [1, 1]} : vector<4x512xf32> to vector<4x384xf32>
    %cst_30 = arith.constant 5.000000e-01 : f32
    %202 = vector.broadcast %cst_30 : f32 to vector<4x384xf32>
    %203 = arith.mulf %202, %201 : vector<4x384xf32>
    %cst_31 = arith.constant 5.000000e-01 : f32
    %204 = vector.broadcast %cst_31 : f32 to vector<4x384xf32>
    %205 = arith.addf %203, %204 : vector<4x384xf32>
    %206 = vector.extract_strided_slice %200 {offsets = [0, 384], sizes = [4, 128], strides = [1, 1]} : vector<4x512xf32> to vector<4x128xf32>
    %207 = vector.extract_strided_slice %205 {offsets = [0, 128], sizes = [4, 128], strides = [1, 1]} : vector<4x384xf32> to vector<4x128xf32>
    %208 = arith.mulf %207, %191 : vector<4x128xf32>
    %209 = vector.extract_strided_slice %205 {offsets = [0, 0], sizes = [4, 128], strides = [1, 1]} : vector<4x384xf32> to vector<4x128xf32>
    %210 = arith.mulf %209, %206 : vector<4x128xf32>
    %211 = arith.addf %208, %210 : vector<4x128xf32>
    %212 = vector.extract_strided_slice %205 {offsets = [0, 256], sizes = [4, 128], strides = [1, 1]} : vector<4x384xf32> to vector<4x128xf32>
    %213 = math.tanh %211 : vector<4x128xf32>
    %214 = arith.mulf %212, %213 : vector<4x128xf32>
    %215 = arith.mulf %86, %214 : vector<4x128xf32>
    %216 = arith.addf %196, %215 : vector<4x128xf32>
    %217 = vector.extract_strided_slice %5 {offsets = [24, 0], sizes = [4, 512], strides = [1, 1]} : vector<32x512xf32> to vector<4x512xf32>
    %cst_32 = arith.constant dense<0.000000e+00> : vector<4x512xf32>
    %218 = tpu.matmul %214, %93, %cst_32 {dimension_numbers = #tpu.dot_dimension_numbers<[1], [0], [0], [1], [0, 0, 1, 1], [], []>} : vector<4x128xf32>, vector<128x512xf32>, vector<4x512xf32> -> vector<4x512xf32>
    %219 = arith.addf %217, %218 : vector<4x512xf32>
    %220 = math.tanh %219 : vector<4x512xf32>
    %221 = vector.extract_strided_slice %220 {offsets = [0, 0], sizes = [4, 384], strides = [1, 1]} : vector<4x512xf32> to vector<4x384xf32>
    %cst_33 = arith.constant 5.000000e-01 : f32
    %222 = vector.broadcast %cst_33 : f32 to vector<4x384xf32>
    %223 = arith.mulf %222, %221 : vector<4x384xf32>
    %cst_34 = arith.constant 5.000000e-01 : f32
    %224 = vector.broadcast %cst_34 : f32 to vector<4x384xf32>
    %225 = arith.addf %223, %224 : vector<4x384xf32>
    %226 = vector.extract_strided_slice %220 {offsets = [0, 384], sizes = [4, 128], strides = [1, 1]} : vector<4x512xf32> to vector<4x128xf32>
    %227 = vector.extract_strided_slice %225 {offsets = [0, 128], sizes = [4, 128], strides = [1, 1]} : vector<4x384xf32> to vector<4x128xf32>
    %228 = arith.mulf %227, %211 : vector<4x128xf32>
    %229 = vector.extract_strided_slice %225 {offsets = [0, 0], sizes = [4, 128], strides = [1, 1]} : vector<4x384xf32> to vector<4x128xf32>
    %230 = arith.mulf %229, %226 : vector<4x128xf32>
    %231 = arith.addf %228, %230 : vector<4x128xf32>
    %232 = vector.extract_strided_slice %225 {offsets = [0, 256], sizes = [4, 128], strides = [1, 1]} : vector<4x384xf32> to vector<4x128xf32>
    %233 = math.tanh %231 : vector<4x128xf32>
    %234 = arith.mulf %232, %233 : vector<4x128xf32>
    %235 = arith.mulf %89, %234 : vector<4x128xf32>
    %236 = arith.addf %216, %235 : vector<4x128xf32>
    %237 = vector.extract_strided_slice %5 {offsets = [28, 0], sizes = [4, 512], strides = [1, 1]} : vector<32x512xf32> to vector<4x512xf32>
    %cst_35 = arith.constant dense<0.000000e+00> : vector<4x512xf32>
    %238 = tpu.matmul %234, %93, %cst_35 {dimension_numbers = #tpu.dot_dimension_numbers<[1], [0], [0], [1], [0, 0, 1, 1], [], []>} : vector<4x128xf32>, vector<128x512xf32>, vector<4x512xf32> -> vector<4x512xf32>
    %239 = arith.addf %237, %238 : vector<4x512xf32>
    %240 = math.tanh %239 : vector<4x512xf32>
    %241 = vector.extract_strided_slice %240 {offsets = [0, 0], sizes = [4, 384], strides = [1, 1]} : vector<4x512xf32> to vector<4x384xf32>
    %cst_36 = arith.constant 5.000000e-01 : f32
    %242 = vector.broadcast %cst_36 : f32 to vector<4x384xf32>
    %243 = arith.mulf %242, %241 : vector<4x384xf32>
    %cst_37 = arith.constant 5.000000e-01 : f32
    %244 = vector.broadcast %cst_37 : f32 to vector<4x384xf32>
    %245 = arith.addf %243, %244 : vector<4x384xf32>
    %246 = vector.extract_strided_slice %240 {offsets = [0, 384], sizes = [4, 128], strides = [1, 1]} : vector<4x512xf32> to vector<4x128xf32>
    %247 = vector.extract_strided_slice %245 {offsets = [0, 128], sizes = [4, 128], strides = [1, 1]} : vector<4x384xf32> to vector<4x128xf32>
    %248 = arith.mulf %247, %231 : vector<4x128xf32>
    %249 = vector.extract_strided_slice %245 {offsets = [0, 0], sizes = [4, 128], strides = [1, 1]} : vector<4x384xf32> to vector<4x128xf32>
    %250 = arith.mulf %249, %246 : vector<4x128xf32>
    %251 = arith.addf %248, %250 : vector<4x128xf32>
    %252 = vector.extract_strided_slice %245 {offsets = [0, 256], sizes = [4, 128], strides = [1, 1]} : vector<4x384xf32> to vector<4x128xf32>
    %253 = math.tanh %251 : vector<4x128xf32>
    %254 = arith.mulf %252, %253 : vector<4x128xf32>
    %255 = arith.mulf %92, %254 : vector<4x128xf32>
    %256 = arith.addf %236, %255 : vector<4x128xf32>
    %c0_38 = arith.constant 0 : index
    %c0_39 = arith.constant 0 : index
    %257 = vector.load %arg4[%c0_38, %c0_39] : memref<128x8xf32, #tpu.memory_space<vmem>>, vector<128x8xf32>
    %cst_40 = arith.constant dense<0.000000e+00> : vector<4x8xf32>
    %258 = tpu.matmul %256, %257, %cst_40 {dimension_numbers = #tpu.dot_dimension_numbers<[1], [0], [0], [1], [0, 0, 1, 1], [], []>} : vector<4x128xf32>, vector<128x8xf32>, vector<4x8xf32> -> vector<4x8xf32>
    %c0_41 = arith.constant 0 : index
    %c0_42 = arith.constant 0 : index
    %259 = vector.load %arg5[%c0_41, %c0_42] : memref<2x4xf32, #tpu.memory_space<vmem>>, vector<2x4xf32>
    %260 = tpu.iota {dimensions = array<i32: 0>} : vector<4x4xi32>
    %c2_i32_43 = arith.constant 2 : i32
    %261 = vector.broadcast %c2_i32_43 : i32 to vector<4x4xi32>
    %262 = arith.cmpi sge, %260, %261 : vector<4x4xi32>
    %263 = vector.extract_strided_slice %258 {offsets = [0, 4], sizes = [4, 4], strides = [1, 1]} : vector<4x8xf32> to vector<4x4xf32>
    %264 = vector.extract_strided_slice %259 {offsets = [1, 0], sizes = [1, 4], strides = [1, 1]} : vector<2x4xf32> to vector<1x4xf32>
    %265 = vector.broadcast %264 : vector<1x4xf32> to vector<4x4xf32>
    %266 = arith.addf %263, %265 : vector<4x4xf32>
    %267 = vector.extract_strided_slice %258 {offsets = [0, 0], sizes = [4, 4], strides = [1, 1]} : vector<4x8xf32> to vector<4x4xf32>
    %268 = vector.extract_strided_slice %259 {offsets = [0, 0], sizes = [1, 4], strides = [1, 1]} : vector<2x4xf32> to vector<1x4xf32>
    %269 = vector.broadcast %268 : vector<1x4xf32> to vector<4x4xf32>
    %270 = arith.addf %267, %269 : vector<4x4xf32>
    %271 = arith.select %262, %266, %270 : vector<4x4xi1>, vector<4x4xf32>
    %c0_44 = arith.constant 0 : index
    %c0_45 = arith.constant 0 : index
    %272 = vector.load %arg6[%c0_44, %c0_45] : memref<4x4xf32, #tpu.memory_space<vmem>>, vector<4x4xf32>
    tpu.vector_store %arg6[%c0_44, %c0_45], %271 {strides = array<i32>} : memref<4x4xf32, #tpu.memory_space<vmem>>, vector<4x4xf32>,
    return
  }
}

</mosaic_0001>

<llo_original>
// kernel: _forward_impl.1
$region0: #{_forward_impl.1}
  #allocation0 [shape = 'u32[]', space=smem, size = 0x4, offset = 0x4, fixed_abs, tag = 'smem constant byte address 0x4 - core index']
  #allocation1 [shape = 'u32[144,128]{1,0:T(1,128)}', space=vmem, size = 0x12000, scoped, tag = 'internal scratch']
  %s0 = inlined_call_operand.vmem [shape: f32[32,32], index: 0, kind: input, shape index: {}]
  %s1 = inlined_call_operand.vmem [shape: f32[32,512], index: 1, kind: input, shape index: {}]
  %s2 = inlined_call_operand.hbm [shape: f32[128,512], index: 2, kind: input, shape index: {}]
  %s3 = inlined_call_operand.vmem [shape: f32[1,512], index: 3, kind: input, shape index: {}]
  %s4 = inlined_call_operand.vmem [shape: f32[128,8], index: 4, kind: input, shape index: {}]
  %s5 = inlined_call_operand.vmem [shape: f32[2,4], index: 5, kind: input, shape index: {}]
  %s6 = inlined_call_operand.hbm [shape: f32[4,4], index: 6, kind: output, shape index: {}]
  %s7 = sld [smem:[#allocation0]]
  $region38: #{_forward_impl.1} parent=0
    _
  %s9 = ssub.s32 1, %s7
  %s10 = scalar_select 0, %s9, %s7
  $region1: #{_forward_impl.1} parent=0
    #allocation2 [shape = 'u8[262144]{0}', space=vmem, size = 0x40000, scoped, tag = 'input window, operand 2, single buffered']
    #allocation3 [shape = 's32[1]{0}', space=sflag, size = 0x4, scoped, tag = 'scoped memory for _forward_impl.1']
    #allocation4 [shape = 's32[1]{0}', space=sflag, size = 0x4, scoped, tag = 'scoped memory for _forward_impl.1']
    #allocation5 [shape = 'u8[2048]{0}', space=vmem, size = 0x800, scoped, tag = 'output window, operand 0, single buffered']
    %11 = vsyncpa [#allocation3], 0
    %12 = vsyncpa [#allocation4], 0
    // Predicated region
    $region2: #{_forward_impl.1} parent=1 // pred_check
      _
    $region3: #{_forward_impl.1} parent=1 // pred_check_branch
      %14 = sbr.rel (0) target = $region5
    $region4: #{_forward_impl.1} parent=1 // pred_region
      _
    $region5: #{_forward_impl.1} parent=1 // pred_fallthru
      _
    // Predicated region
    $region6: #{_forward_impl.1} parent=1 // pred_check
      _
    $region7: #{_forward_impl.1} parent=1 // pred_check_branch
      %16 = sbr.rel (0) target = $region9
    $region8: #{_forward_impl.1} parent=1 // pred_region
      _
    $region9: #{_forward_impl.1} parent=1 // pred_fallthru
      _
    // Predicated region
    $region10: #{_forward_impl.1} parent=1 // pred_check
      _
    $region11: #{_forward_impl.1} parent=1 // pred_check_branch
      %18 = sbr.rel (0) target = $region13
    $region12: #{_forward_impl.1} parent=1 // pred_region
      %s20 = ssub.s32 8192, 8192
      %21 = vsyncadd [#allocation3], %s20
      %s22 = sshll.u32 [#allocation2], 4
      %s23 = int_to_ptr.vmem [resolvable:$true] %s22
      %28 = dma.hbm_to_vmem [thread:$0]  %s2, 8192, %s23, [#allocation3], 512, 512, 32
    $region13: #{_forward_impl.1} parent=1 // pred_fallthru
      _
    // Predicated region
    $region14: #{_forward_impl.1} parent=1 // pred_check
      _
    $region15: #{_forward_impl.1} parent=1 // pred_check_branch
      %30 = sbr.rel (0) target = $region17
    $region16: #{_forward_impl.1} parent=1 // pred_region
      _
    $region17: #{_forward_impl.1} parent=1 // pred_fallthru
      _
    // Predicated region
    $region18: #{_forward_impl.1} parent=1 // pred_check
      _
    $region19: #{_forward_impl.1} parent=1 // pred_check_branch
      %32 = sbr.rel (0) target = $region21
    $region20: #{_forward_impl.1} parent=1 // pred_region
      _
    $region21: #{_forward_impl.1} parent=1 // pred_fallthru
      _
    // Predicated region
    $region22: #{_forward_impl.1} parent=1 // pred_check
      _
    $region23: #{_forward_impl.1} parent=1 // pred_check_branch
      %34 = sbr.rel (0) target = $region25
    $region24: #{_forward_impl.1} parent=1 // pred_region
      _
    $region25: #{_forward_impl.1} parent=1 // pred_fallthru
      _
    // Predicated region
    $region26: #{_forward_impl.1} parent=1 // pred_check
      _
    $region27: #{_forward_impl.1} parent=1 // pred_check_branch
      %36 = sbr.rel (0) target = $region29
    $region28: #{_forward_impl.1} parent=1 // pred_region
      %37 = dma.done [#allocation3], 8192
    $region29: #{_forward_impl.1} parent=1 // pred_fallthru
      _
    %v38 = vld [vmem:[%s0] sm:$0xff]
    %v39 = vld [vmem:[%s0 + $0x8] sm:$0xff]
    %v40 = vld [vmem:[%s0 + $0x10] sm:$0xff]
    %v41 = vld [vmem:[%s0 + $0x18] sm:$0xff]
    %v42 = vld [vmem:[%s1] sm:$0xff]
    %v43 = vld [vmem:[%s1 + $0x8] sm:$0xff]
    %v44 = vld [vmem:[%s1 + $0x10] sm:$0xff]
    %v45 = vld [vmem:[%s1 + $0x18] sm:$0xff]
    %v46 = vld [vmem:[%s1 + $0x20] sm:$0xff]
    %v47 = vld [vmem:[%s1 + $0x28] sm:$0xff]
    %v48 = vld [vmem:[%s1 + $0x30] sm:$0xff]
    %v49 = vld [vmem:[%s1 + $0x38] sm:$0xff]
    %v50 = vld [vmem:[%s1 + $0x40] sm:$0xff]
    %v51 = vld [vmem:[%s1 + $0x48] sm:$0xff]
    %v52 = vld [vmem:[%s1 + $0x50] sm:$0xff]
    %v53 = vld [vmem:[%s1 + $0x58] sm:$0xff]
    %v54 = vld [vmem:[%s1 + $0x60] sm:$0xff]
    %v55 = vld [vmem:[%s1 + $0x68] sm:$0xff]
    %v56 = vld [vmem:[%s1 + $0x70] sm:$0xff]
    %v57 = vld [vmem:[%s1 + $0x78] sm:$0xff]
    %v58 = vld [vmem:[%s3] sm:$0xf]
    %v60 = vlaneseq
    %v61 = vshrl.u32 %v60, 7
    %v62 = vsub.s32 0, %v61
    %v63 = vrot.slane %v58, %v62
    %v64 = vlaneseq
    %v65 = vshrl.u32 %v64, 7
    %v66 = vsub.s32 1, %v65
    %v67 = vrot.slane %v58, %v66
    %v68 = vlaneseq
    %v69 = vshrl.u32 %v68, 7
    %v70 = vsub.s32 2, %v69
    %v71 = vrot.slane %v58, %v70
    %v72 = vlaneseq
    %v73 = vshrl.u32 %v72, 7
    %v74 = vsub.s32 3, %v73
    %v75 = vrot.slane %v58, %v74
    %vm80 = vcmask 261120
    %v82 = vsel %vm80, %v38, 0
    %v85 = vsel %vm80, %v39, 0
    %v88 = vsel %vm80, %v40, 0
    %v91 = vsel %vm80, %v41, 0
    %93 = vmatprep.subr.mxu0 %v43
    %94 = vmatpush1.msra.mxu0 %v42
    %95 = vmatprep.subr.mxu0 %v47
    %96 = vmatpush1.msra.mxu0 %v46
    %97 = vmatprep.subr.mxu0 %v51
    %98 = vmatpush1.msra.mxu0 %v50
    %99 = vmatprep.subr.mxu0 %v55
    %100 = vmatpush1.msra.mxu0 %v54
    %101 = vmatprep.subr.mxu0 0.0
    %102 = vmatpush1.msra.mxu0 0.0
    %103 = vmatprep.subr.mxu0 0.0
    %104 = vmatpush1.msra.mxu0 0.0
    %105 = vmatprep.subr.mxu0 0.0
    %106 = vmatpush1.msra.mxu0 0.0
    %107 = vmatprep.subr.mxu0 0.0
    %108 = vmatpush1.msra.mxu0 0.0
    %109 = vmatprep.subr.mxu0 0.0
    %110 = vmatpush1.msra.mxu0 0.0
    %111 = vmatprep.subr.mxu0 0.0
    %112 = vmatpush1.msra.mxu0 0.0
    %113 = vmatprep.subr.mxu0 0.0
    %114 = vmatpush1.msra.mxu0 0.0
    %115 = vmatprep.subr.mxu0 0.0
    %116 = vmatpush1.msra.mxu0 0.0
    %117 = vmatprep.subr.mxu0 0.0
    %118 = vmatpush1.msra.mxu0 0.0
    %119 = vmatprep.subr.mxu0 0.0
    %120 = vmatpush1.msra.mxu0 0.0
    %121 = vmatprep.subr.mxu0 0.0
    %122 = vmatpush1.msra.mxu0 0.0
    %123 = vmatprep.subr.mxu0 0.0
    %124 = vmatpush1.msra.mxu0 0.0
    %125 = vmatprep.subr.mxu0 0.0
    %126 = vmatpush1.msra.mxu0 0.0
    %127 = vmatprep.subr.mxu0 0.0
    %128 = vmatpush1.msra.mxu0 0.0
    %129 = vmatprep.subr.mxu0 0.0
    %130 = vmatpush1.msra.mxu0 0.0
    %131 = vmatprep.subr.mxu0 0.0
    %132 = vmatpush1.msra.mxu0 0.0
    %133 = vmatprep.subr.mxu0 0.0
    %134 = vmatpush1.msra.mxu0 0.0
    %135 = vmatprep.subr.mxu0 0.0
    %136 = vmatpush1.msra.mxu0 0.0
    %137 = vmatprep.subr.mxu0 0.0
    %138 = vmatpush1.msra.mxu0 0.0
    %139 = vmatprep.subr.mxu0 0.0
    %140 = vmatpush1.msra.mxu0 0.0
    %141 = vmatprep.subr.mxu0 0.0
    %142 = vmatpush1.msra.mxu0 0.0
    %143 = vmatprep.subr.mxu0 0.0
    %144 = vmatpush1.msra.mxu0 0.0
    %145 = vmatprep.subr.mxu0 0.0
    %146 = vmatpush1.msra.mxu0 0.0
    %147 = vmatprep.subr.mxu0 0.0
    %148 = vmatpush1.msra.mxu0 0.0
    %149 = vmatprep.subr.mxu0 0.0
    %150 = vmatpush1.msra.mxu0 0.0
    %151 = vmatprep.subr.mxu0 0.0
    %152 = vmatpush1.msra.mxu0 0.0
    %153 = vmatprep.subr.mxu0 0.0
    %154 = vmatpush1.msra.mxu0 0.0
    %155 = vmatprep.subr.mxu0 0.0
    %156 = vmatpush1.msra.mxu0 0.0
    %157 = vmatprep.mubr.f32.mxu0 0.0
    %158 = vmatmul.mubr.f32.gmra.mrb[0].mxu0 %v82
    %v159 = vpop.f32.mrb[0].mxu0
    %v160 = vadd.f32 %v63, %v159
    %v161 = vpop.f32.mrb[0].mxu0
    %v162 = vadd.f32 %v67, %v161
    %163 = vmatprep.mubr.f32.mxu0 0.0
    %164 = vmatmul.mubr.f32.gmra.mrb[0].mxu0 %v85
    %v165 = vpop.f32.mrb[0].mxu0
    %v166 = vadd.f32 %v63, %v165
    %v167 = vpop.f32.mrb[0].mxu0
    %v168 = vadd.f32 %v67, %v167
    %169 = vmatprep.mubr.f32.mxu0 0.0
    %170 = vmatmul.mubr.f32.gmra.mrb[0].mxu0 %v88
    %v171 = vpop.f32.mrb[0].mxu0
    %v172 = vadd.f32 %v63, %v171
    %v173 = vpop.f32.mrb[0].mxu0
    %v174 = vadd.f32 %v67, %v173
    %175 = vmatprep.mubr.f32.mxu0 0.0
    %176 = vmatmul.mubr.f32.gmra.mrb[0].mxu0 %v91
    %v177 = vpop.f32.mrb[0].mxu0
    %v178 = vadd.f32 %v63, %v177
    %v179 = vpop.f32.mrb[0].mxu0
    %v180 = vadd.f32 %v67, %v179
    %181 = vdwg.mxu0
    %182 = vmatprep.subr.mxu0 %v45
    %183 = vmatpush1.msra.mxu0 %v44
    %184 = vmatprep.subr.mxu0 %v49
    %185 = vmatpush1.msra.mxu0 %v48
    %186 = vmatprep.subr.mxu0 %v53
    %187 = vmatpush1.msra.mxu0 %v52
    %188 = vmatprep.subr.mxu0 %v57
    %189 = vmatpush1.msra.mxu0 %v56
    %190 = vmatprep.subr.mxu0 0.0
    %191 = vmatpush1.msra.mxu0 0.0
    %192 = vmatprep.subr.mxu0 0.0
    %193 = vmatpush1.msra.mxu0 0.0
    %194 = vmatprep.subr.mxu0 0.0
    %195 = vmatpush1.msra.mxu0 0.0
    %196 = vmatprep.subr.mxu0 0.0
    %197 = vmatpush1.msra.mxu0 0.0
    %198 = vmatprep.subr.mxu0 0.0
    %199 = vmatpush1.msra.mxu0 0.0
    %200 = vmatprep.subr.mxu0 0.0
    %201 = vmatpush1.msra.mxu0 0.0
    %202 = vmatprep.subr.mxu0 0.0
    %203 = vmatpush1.msra.mxu0 0.0
    %204 = vmatprep.subr.mxu0 0.0
    %205 = vmatpush1.msra.mxu0 0.0
    %206 = vmatprep.subr.mxu0 0.0
    %207 = vmatpush1.msra.mxu0 0.0
    %208 = vmatprep.subr.mxu0 0.0
    %209 = vmatpush1.msra.mxu0 0.0
    %210 = vmatprep.subr.mxu0 0.0
    %211 = vmatpush1.msra.mxu0 0.0
    %212 = vmatprep.subr.mxu0 0.0
    %213 = vmatpush1.msra.mxu0 0.0
    %214 = vmatprep.subr.mxu0 0.0
    %215 = vmatpush1.msra.mxu0 0.0
    %216 = vmatprep.subr.mxu0 0.0
    %217 = vmatpush1.msra.mxu0 0.0
    %218 = vmatprep.subr.mxu0 0.0
    %219 = vmatpush1.msra.mxu0 0.0
    %220 = vmatprep.subr.mxu0 0.0
    %221 = vmatpush1.msra.mxu0 0.0
    %222 = vmatprep.subr.mxu0 0.0
    %223 = vmatpush1.msra.mxu0 0.0
    %224 = vmatprep.subr.mxu0 0.0
    %225 = vmatpush1.msra.mxu0 0.0
    %226 = vmatprep.subr.mxu0 0.0
    %227 = vmatpush1.msra.mxu0 0.0
    %228 = vmatprep.subr.mxu0 0.0
    %229 = vmatpush1.msra.mxu0 0.0
    %230 = vmatprep.subr.mxu0 0.0
    %231 = vmatpush1.msra.mxu0 0.0
    %232 = vmatprep.subr.mxu0 0.0
    %233 = vmatpush1.msra.mxu0 0.0
    %234 = vmatprep.subr.mxu0 0.0
    %235 = vmatpush1.msra.mxu0 0.0
    %236 = vmatprep.subr.mxu0 0.0
    %237 = vmatpush1.msra.mxu0 0.0
    %238 = vmatprep.subr.mxu0 0.0
    %239 = vmatpush1.msra.mxu0 0.0
    %240 = vmatprep.subr.mxu0 0.0
    %241 = vmatpush1.msra.mxu0 0.0
    %242 = vmatprep.subr.mxu0 0.0
    %243 = vmatpush1.msra.mxu0 0.0
    %244 = vmatprep.subr.mxu0 0.0
    %245 = vmatpush1.msra.mxu0 0.0
    %246 = vmatprep.mubr.f32.mxu0 0.0
    %247 = vmatmul.mubr.f32.gmra.mrb[0].mxu0 %v82
    %v248 = vpop.f32.mrb[0].mxu0
    %v249 = vadd.f32 %v71, %v248
    %v250 = vpop.f32.mrb[0].mxu0
    %v251 = vadd.f32 %v75, %v250
    %252 = vmatprep.mubr.f32.mxu0 0.0
    %253 = vmatmul.mubr.f32.gmra.mrb[0].mxu0 %v85
    %v254 = vpop.f32.mrb[0].mxu0
    %v255 = vadd.f32 %v71, %v254
    %v256 = vpop.f32.mrb[0].mxu0
    %v257 = vadd.f32 %v75, %v256
    %258 = vmatprep.mubr.f32.mxu0 0.0
    %259 = vmatmul.mubr.f32.gmra.mrb[0].mxu0 %v88
    %v260 = vpop.f32.mrb[0].mxu0
    %v261 = vadd.f32 %v71, %v260
    %v262 = vpop.f32.mrb[0].mxu0
    %v263 = vadd.f32 %v75, %v262
    %264 = vmatprep.mubr.f32.mxu0 0.0
    %265 = vmatmul.mubr.f32.gmra.mrb[0].mxu0 %v91
    %v266 = vpop.f32.mrb[0].mxu0
    %v267 = vadd.f32 %v71, %v266
    %v268 = vpop.f32.mrb[0].mxu0
    %v269 = vadd.f32 %v75, %v268
    %270 = vdwg.mxu0
    %v271 = vlaneseq
    %v272 = vshrl.u32 %v271, 7
    %v273 = vadd.s32 %v272, 8
    %v274 = vadd.s32 %v272, 16
    %v275 = vadd.s32 %v272, 24
    %vm276 = vcmp.lt.s32.totalorder %v272, 0
    %v277 = vsub.s32 0, %v272
    %v278 = vsel %vm276, %v277, %v272
    %v279 = vshrl.u32 %v278, 2
    %v280 = vand.u32 %v278, 3
    %v281 = vsub.s32 0, %v280
    %v282 = vsel %vm276, %v281, %v280
    %vm283 = vcmp.lt.s32.totalorder %v273, 0
    %v284 = vsub.s32 0, %v273
    %v285 = vsel %vm283, %v284, %v273
    %v286 = vshrl.u32 %v285, 2
    %v287 = vand.u32 %v285, 3
    %v288 = vsub.s32 0, %v287
    %v289 = vsel %vm283, %v288, %v287
    %vm290 = vcmp.lt.s32.totalorder %v274, 0
    %v291 = vsub.s32 0, %v274
    %v292 = vsel %vm290, %v291, %v274
    %v293 = vshrl.u32 %v292, 2
    %v294 = vand.u32 %v292, 3
    %v295 = vsub.s32 0, %v294
    %v296 = vsel %vm290, %v295, %v294
    %vm297 = vcmp.lt.s32.totalorder %v275, 0
    %v298 = vsub.s32 0, %v275
    %v299 = vsel %vm297, %v298, %v275
    %v300 = vshrl.u32 %v299, 2
    %v301 = vand.u32 %v299, 3
    %v302 = vsub.s32 0, %v301
    %v303 = vsel %vm297, %v302, %v301
    %vm304 = vcmp.ne.s32.totalorder %v282, 0
    %vm305 = vcmp.ne.s32.totalorder %v289, 0
    %vm306 = vcmp.ne.s32.totalorder %v296, 0
    %vm307 = vcmp.ne.s32.totalorder %v303, 0
    %vm308 = vcmp.lt.s32.totalorder %v282, 0
    %vm309 = vcmp.lt.s32.totalorder %v289, 0
    %vm310 = vcmp.lt.s32.totalorder %v296, 0
    %vm311 = vcmp.lt.s32.totalorder %v303, 0
    %vm312 = vmand %vm308, %vm304
    %vm313 = vmand %vm309, %vm305
    %vm314 = vmand %vm310, %vm306
    %vm315 = vmand %vm311, %vm307
    %v316 = vadd.s32 %v282, 4
    %v317 = vadd.s32 %v289, 4
    %v318 = vadd.s32 %v296, 4
    %v319 = vadd.s32 %v303, 4
    %v320 = vsel %vm312, %v316, %v282
    %v321 = vsel %vm313, %v317, %v289
    %v322 = vsel %vm314, %v318, %v296
    %v323 = vsel %vm315, %v319, %v303
    %vm324 = vcmp.ge.s32.totalorder %v320, 2
    %vm325 = vcmp.ge.s32.totalorder %v321, 2
    %vm326 = vcmp.ge.s32.totalorder %v322, 2
    %vm327 = vcmp.ge.s32.totalorder %v323, 2
    %332 = vrot.lane.b32.xlu0 %v251, 1
    %v333 = vpop.permute.xlu0 %332
    %334 = vrot.lane.b32.xlu0 %v257, 1
    %v335 = vpop.permute.xlu0 %334
    %336 = vrot.lane.b32.xlu0 %v263, 1
    %v337 = vpop.permute.xlu0 %336
    %338 = vrot.lane.b32.xlu0 %v269, 1
    %v339 = vpop.permute.xlu0 %338
    %v344 = vsel %vm324, %v251, %v333
    %v345 = vsel %vm325, %v257, %v335
    %v346 = vsel %vm326, %v263, %v337
    %v347 = vsel %vm327, %v269, %v339
    %v349 = vrot.slane %v344, 4
    %v351 = vmax.f32 %v344, %v349
    %v352 = vmax.f32 %v351, %v345
    %v354 = vrot.slane %v345, 4
    %v356 = vmax.f32 %v352, %v354
    %v357 = vmax.f32 %v356, %v346
    %v359 = vrot.slane %v346, 4
    %v361 = vmax.f32 %v357, %v359
    %v362 = vmax.f32 %v361, %v347
    %v364 = vrot.slane %v347, 4
    %v366 = vmax.f32 %v362, %v364
    %v367 = vsub.f32 %v344, %v366
    %v368 = vmul.f32 %v367, 1.442695
    %v369 = vpow.pop %v368
    %v371 = vrot.slane %v366, 4
    %v373 = vsub.f32 %v344, %v371
    %v374 = vmul.f32 %v373, 1.442695
    %v375 = vpow.pop %v374
    %v376 = vsub.f32 %v345, %v366
    %v377 = vmul.f32 %v376, 1.442695
    %v378 = vpow.pop %v377
    %v379 = vsub.f32 %v345, %v371
    %v380 = vmul.f32 %v379, 1.442695
    %v381 = vpow.pop %v380
    %v382 = vsub.f32 %v346, %v366
    %v383 = vmul.f32 %v382, 1.442695
    %v384 = vpow.pop %v383
    %v385 = vsub.f32 %v346, %v371
    %v386 = vmul.f32 %v385, 1.442695
    %v387 = vpow.pop %v386
    %v388 = vsub.f32 %v347, %v366
    %v389 = vmul.f32 %v388, 1.442695
    %v390 = vpow.pop %v389
    %v391 = vsub.f32 %v347, %v371
    %v392 = vmul.f32 %v391, 1.442695
    %v393 = vpow.pop %v392
    %v395 = vrot.slane %v375, 4
    %v397 = vadd.f32 %v369, %v395
    %v398 = vadd.f32 %v397, %v378
    %v400 = vrot.slane %v381, 4
    %v402 = vadd.f32 %v398, %v400
    %v403 = vadd.f32 %v402, %v384
    %v405 = vrot.slane %v387, 4
    %v407 = vadd.f32 %v403, %v405
    %v408 = vadd.f32 %v407, %v390
    %v410 = vrot.slane %v393, 4
    %v412 = vadd.f32 %v408, %v410
    %v413 = vrcp.pop %v412
    %v414 = vmul.f32 1.0, %v413
    %v415 = vmul.f32 %v369, %v414
    %417 = vset.pattern.permute.xlu0 97
    %418 = vperm.xlu0 %417, %v415
    %v419 = vpop.permute.xlu0 %418
    %v422 = vrot.slane %v414, 4
    %v424 = vmul.f32 %v375, %v422
    %426 = vset.pattern.permute.xlu0 97
    %427 = vperm.xlu0 %426, %v424
    %v428 = vpop.permute.xlu0 %427
    %v430 = vmul.f32 %v378, %v414
    %432 = vset.pattern.permute.xlu0 97
    %433 = vperm.xlu0 %432, %v430
    %v434 = vpop.permute.xlu0 %433
    %v436 = vmul.f32 %v381, %v422
    %438 = vset.pattern.permute.xlu0 97
    %439 = vperm.xlu0 %438, %v436
    %v440 = vpop.permute.xlu0 %439
    %v442 = vmul.f32 %v384, %v414
    %444 = vset.pattern.permute.xlu0 97
    %445 = vperm.xlu0 %444, %v442
    %v446 = vpop.permute.xlu0 %445
    %v448 = vmul.f32 %v387, %v422
    %450 = vset.pattern.permute.xlu0 97
    %451 = vperm.xlu0 %450, %v448
    %v452 = vpop.permute.xlu0 %451
    %v454 = vmul.f32 %v390, %v414
    %456 = vset.pattern.permute.xlu0 97
    %457 = vperm.xlu0 %456, %v454
    %v458 = vpop.permute.xlu0 %457
    %v460 = vmul.f32 %v393, %v422
    %462 = vset.pattern.permute.xlu0 97
    %463 = vperm.xlu0 %462, %v460
    %v464 = vpop.permute.xlu0 %463
    %v466 = vld [vmem:[#allocation2] sm:$0xff]
    %v467 = vld [vmem:[#allocation2 + $0x8] sm:$0xff]
    %v468 = vld [vmem:[#allocation2 + $0x10] sm:$0xff]
    %v469 = vld [vmem:[#allocation2 + $0x18] sm:$0xff]
    %v470 = vld [vmem:[#allocation2 + $0x20] sm:$0xff]
    %v471 = vld [vmem:[#allocation2 + $0x28] sm:$0xff]
    %v472 = vld [vmem:[#allocation2 + $0x30] sm:$0xff]
    %v473 = vld [vmem:[#allocation2 + $0x38] sm:$0xff]
    %v474 = vld [vmem:[#allocation2 + $0x40] sm:$0xff]
    %v475 = vld [vmem:[#allocation2 + $0x48] sm:$0xff]
    %v476 = vld [vmem:[#allocation2 + $0x50] sm:$0xff]
    %v477 = vld [vmem:[#allocation2 + $0x58] sm:$0xff]
    %v478 = vld [vmem:[#allocation2 + $0x60] sm:$0xff]
    %v479 = vld [vmem:[#allocation2 + $0x68] sm:$0xff]
    %v480 = vld [vmem:[#allocation2 + $0x70] sm:$0xff]
    %v481 = vld [vmem:[#allocation2 + $0x78] sm:$0xff]
    %v482 = vld [vmem:[#allocation2 + $0x80] sm:$0xff]
    %v483 = vld [vmem:[#allocation2 + $0x88] sm:$0xff]
    %v484 = vld [vmem:[#allocation2 + $0x90] sm:$0xff]
    %v485 = vld [vmem:[#allocation2 + $0x98] sm:$0xff]
    %v486 = vld [vmem:[#allocation2 + $0xa0] sm:$0xff]
    %v487 = vld [vmem:[#allocation2 + $0xa8] sm:$0xff]
    %v488 = vld [vmem:[#allocation2 + $0xb0] sm:$0xff]
    %v489 = vld [vmem:[#allocation2 + $0xb8] sm:$0xff]
    %v490 = vld [vmem:[#allocation2 + $0xc0] sm:$0xff]
    %v491 = vld [vmem:[#allocation2 + $0xc8] sm:$0xff]
    %v492 = vld [vmem:[#allocation2 + $0xd0] sm:$0xff]
    %v493 = vld [vmem:[#allocation2 + $0xd8] sm:$0xff]
    %v494 = vld [vmem:[#allocation2 + $0xe0] sm:$0xff]
    %v495 = vld [vmem:[#allocation2 + $0xe8] sm:$0xff]
    %v496 = vld [vmem:[#allocation2 + $0xf0] sm:$0xff]
    %v497 = vld [vmem:[#allocation2 + $0xf8] sm:$0xff]
    %v498 = vld [vmem:[#allocation2 + $0x100] sm:$0xff]
    %v499 = vld [vmem:[#allocation2 + $0x108] sm:$0xff]
    %v500 = vld [vmem:[#allocation2 + $0x110] sm:$0xff]
    %v501 = vld [vmem:[#allocation2 + $0x118] sm:$0xff]
    %v502 = vld [vmem:[#allocation2 + $0x120] sm:$0xff]
    %v503 = vld [vmem:[#allocation2 + $0x128] sm:$0xff]
    %v504 = vld [vmem:[#allocation2 + $0x130] sm:$0xff]
    %v505 = vld [vmem:[#allocation2 + $0x138] sm:$0xff]
    %v506 = vld [vmem:[#allocation2 + $0x140] sm:$0xff]
    %v507 = vld [vmem:[#allocation2 + $0x148] sm:$0xff]
    %v508 = vld [vmem:[#allocation2 + $0x150] sm:$0xff]
    %v509 = vld [vmem:[#allocation2 + $0x158] sm:$0xff]
    %v510 = vld [vmem:[#allocation2 + $0x160] sm:$0xff]
    %v511 = vld [vmem:[#allocation2 + $0x168] sm:$0xff]
    %v512 = vld [vmem:[#allocation2 + $0x170] sm:$0xff]
    %v513 = vld [vmem:[#allocation2 + $0x178] sm:$0xff]
    %v514 = vld [vmem:[#allocation2 + $0x180] sm:$0xff]
    %v515 = vld [vmem:[#allocation2 + $0x188] sm:$0xff]
    %v516 = vld [vmem:[#allocation2 + $0x190] sm:$0xff]
    %v517 = vld [vmem:[#allocation2 + $0x198] sm:$0xff]
    %v518 = vld [vmem:[#allocation2 + $0x1a0] sm:$0xff]
    %v519 = vld [vmem:[#allocation2 + $0x1a8] sm:$0xff]
    %v520 = vld [vmem:[#allocation2 + $0x1b0] sm:$0xff]
    %v521 = vld [vmem:[#allocation2 + $0x1b8] sm:$0xff]
    %v522 = vld [vmem:[#allocation2 + $0x1c0] sm:$0xff]
    %v523 = vld [vmem:[#allocation2 + $0x1c8] sm:$0xff]
    %v524 = vld [vmem:[#allocation2 + $0x1d0] sm:$0xff]
    %v525 = vld [vmem:[#allocation2 + $0x1d8] sm:$0xff]
    %v526 = vld [vmem:[#allocation2 + $0x1e0] sm:$0xff]
    %v527 = vld [vmem:[#allocation2 + $0x1e8] sm:$0xff]
    %v528 = vld [vmem:[#allocation2 + $0x1f0] sm:$0xff]
    %v529 = vld [vmem:[#allocation2 + $0x1f8] sm:$0xff]
    %530 = vmatprep.subr.mxu0 %v467
    %531 = vmatpush1.msra.mxu0 %v466
    %532 = vmatprep.subr.mxu0 %v471
    %533 = vmatpush1.msra.mxu0 %v470
    %534 = vmatprep.subr.mxu0 %v475
    %535 = vmatpush1.msra.mxu0 %v474
    %536 = vmatprep.subr.mxu0 %v479
    %537 = vmatpush1.msra.mxu0 %v478
    %538 = vmatprep.subr.mxu0 %v483
    %539 = vmatpush1.msra.mxu0 %v482
    %540 = vmatprep.subr.mxu0 %v487
    %541 = vmatpush1.msra.mxu0 %v486
    %542 = vmatprep.subr.mxu0 %v491
    %543 = vmatpush1.msra.mxu0 %v490
    %544 = vmatprep.subr.mxu0 %v495
    %545 = vmatpush1.msra.mxu0 %v494
    %546 = vmatprep.subr.mxu0 %v499
    %547 = vmatpush1.msra.mxu0 %v498
    %548 = vmatprep.subr.mxu0 %v503
    %549 = vmatpush1.msra.mxu0 %v502
    %550 = vmatprep.subr.mxu0 %v507
    %551 = vmatpush1.msra.mxu0 %v506
    %552 = vmatprep.subr.mxu0 %v511
    %553 = vmatpush1.msra.mxu0 %v510
    %554 = vmatprep.subr.mxu0 %v515
    %555 = vmatpush1.msra.mxu0 %v514
    %556 = vmatprep.subr.mxu0 %v519
    %557 = vmatpush1.msra.mxu0 %v518
    %558 = vmatprep.subr.mxu0 %v523
    %559 = vmatpush1.msra.mxu0 %v522
    %560 = vmatprep.subr.mxu0 %v527
    %561 = vmatpush1.msra.mxu0 %v526
    %562 = vmatprep.subr.mxu0 0.0
    %563 = vmatpush1.msra.mxu0 0.0
    %564 = vmatprep.subr.mxu0 0.0
    %565 = vmatpush1.msra.mxu0 0.0
    %566 = vmatprep.subr.mxu0 0.0
    %567 = vmatpush1.msra.mxu0 0.0
    %568 = vmatprep.subr.mxu0 0.0
    %569 = vmatpush1.msra.mxu0 0.0
    %570 = vmatprep.subr.mxu0 0.0
    %571 = vmatpush1.msra.mxu0 0.0
    %572 = vmatprep.subr.mxu0 0.0
    %573 = vmatpush1.msra.mxu0 0.0
    %574 = vmatprep.subr.mxu0 0.0
    %575 = vmatpush1.msra.mxu0 0.0
    %576 = vmatprep.subr.mxu0 0.0
    %577 = vmatpush1.msra.mxu0 0.0
    %578 = vmatprep.subr.mxu0 0.0
    %579 = vmatpush1.msra.mxu0 0.0
    %580 = vmatprep.subr.mxu0 0.0
    %581 = vmatpush1.msra.mxu0 0.0
    %582 = vmatprep.subr.mxu0 0.0
    %583 = vmatpush1.msra.mxu0 0.0
    %584 = vmatprep.subr.mxu0 0.0
    %585 = vmatpush1.msra.mxu0 0.0
    %586 = vmatprep.subr.mxu0 0.0
    %587 = vmatpush1.msra.mxu0 0.0
    %588 = vmatprep.subr.mxu0 0.0
    %589 = vmatpush1.msra.mxu0 0.0
    %590 = vmatprep.subr.mxu0 0.0
    %591 = vmatpush1.msra.mxu0 0.0
    %592 = vmatprep.subr.mxu0 0.0
    %593 = vmatpush1.msra.mxu0 0.0
    %594 = vmatprep.mubr.f32.mxu0 0.0
    %595 = vmatmul.mubr.f32.gmra.mrb[0].mxu0 0.0
    %v596 = vpop.f32.mrb[0].mxu0
    %v597 = vadd.f32 0.0, %v596
    %v598 = vpop.f32.mrb[0].mxu0
    %v599 = vadd.f32 0.0, %v598
    %600 = vdwg.mxu0
    %601 = vmatprep.subr.mxu0 %v469
    %602 = vmatpush1.msra.mxu0 %v468
    %603 = vmatprep.subr.mxu0 %v473
    %604 = vmatpush1.msra.mxu0 %v472
    %605 = vmatprep.subr.mxu0 %v477
    %606 = vmatpush1.msra.mxu0 %v476
    %607 = vmatprep.subr.mxu0 %v481
    %608 = vmatpush1.msra.mxu0 %v480
    %609 = vmatprep.subr.mxu0 %v485
    %610 = vmatpush1.msra.mxu0 %v484
    %611 = vmatprep.subr.mxu0 %v489
    %612 = vmatpush1.msra.mxu0 %v488
    %613 = vmatprep.subr.mxu0 %v493
    %614 = vmatpush1.msra.mxu0 %v492
    %615 = vmatprep.subr.mxu0 %v497
    %616 = vmatpush1.msra.mxu0 %v496
    %617 = vmatprep.subr.mxu0 %v501
    %618 = vmatpush1.msra.mxu0 %v500
    %619 = vmatprep.subr.mxu0 %v505
    %620 = vmatpush1.msra.mxu0 %v504
    %621 = vmatprep.subr.mxu0 %v509
    %622 = vmatpush1.msra.mxu0 %v508
    %623 = vmatprep.subr.mxu0 %v513
    %624 = vmatpush1.msra.mxu0 %v512
    %625 = vmatprep.subr.mxu0 %v517
    %626 = vmatpush1.msra.mxu0 %v516
    %627 = vmatprep.subr.mxu0 %v521
    %628 = vmatpush1.msra.mxu0 %v520
    %629 = vmatprep.subr.mxu0 %v525
    %630 = vmatpush1.msra.mxu0 %v524
    %631 = vmatprep.subr.mxu0 %v529
    %632 = vmatpush1.msra.mxu0 %v528
    %633 = vmatprep.subr.mxu0 0.0
    %634 = vmatpush1.msra.mxu0 0.0
    %635 = vmatprep.subr.mxu0 0.0
    %636 = vmatpush1.msra.mxu0 0.0
    %637 = vmatprep.subr.mxu0 0.0
    %638 = vmatpush1.msra.mxu0 0.0
    %639 = vmatprep.subr.mxu0 0.0
    %640 = vmatpush1.msra.mxu0 0.0
    %641 = vmatprep.subr.mxu0 0.0
    %642 = vmatpush1.msra.mxu0 0.0
    %643 = vmatprep.subr.mxu0 0.0
    %644 = vmatpush1.msra.mxu0 0.0
    %645 = vmatprep.subr.mxu0 0.0
    %646 = vmatpush1.msra.mxu0 0.0
    %647 = vmatprep.subr.mxu0 0.0
    %648 = vmatpush1.msra.mxu0 0.0
    %649 = vmatprep.subr.mxu0 0.0
    %650 = vmatpush1.msra.mxu0 0.0
    %651 = vmatprep.subr.mxu0 0.0
    %652 = vmatpush1.msra.mxu0 0.0
    %653 = vmatprep.subr.mxu0 0.0
    %654 = vmatpush1.msra.mxu0 0.0
    %655 = vmatprep.subr.mxu0 0.0
    %656 = vmatpush1.msra.mxu0 0.0
    %657 = vmatprep.subr.mxu0 0.0
    %658 = vmatpush1.msra.mxu0 0.0
    %659 = vmatprep.subr.mxu0 0.0
    %660 = vmatpush1.msra.mxu0 0.0
    %661 = vmatprep.subr.mxu0 0.0
    %662 = vmatpush1.msra.mxu0 0.0
    %663 = vmatprep.subr.mxu0 0.0
    %664 = vmatpush1.msra.mxu0 0.0
    %665 = vmatprep.mubr.f32.mxu0 0.0
    %666 = vmatmul.mubr.f32.gmra.mrb[0].mxu0 0.0
    %v667 = vpop.f32.mrb[0].mxu0
    %v668 = vadd.f32 0.0, %v667
    %v669 = vpop.f32.mrb[0].mxu0
    %v670 = vadd.f32 0.0, %v669
    %671 = vdwg.mxu0
    %v672 = vadd.f32 %v160, %v597
    %v673 = vadd.f32 %v162, %v599
    %v674 = vadd.f32 %v249, %v668
    %v675 = vadd.f32 %v251, %v670
    %v676 = vtanh.pop %v672
    %v677 = vtanh.pop %v673
    %v678 = vtanh.pop %v674
    %v679 = vtanh.pop %v675
    %v680 = vmul.f32 %v676, 0.5
    %v681 = vmul.f32 %v677, 0.5
    %v682 = vmul.f32 %v678, 0.5
    %v683 = vadd.f32 %v680, 0.5
    %v684 = vadd.f32 %v681, 0.5
    %v685 = vadd.f32 %v682, 0.5
    %v686 = vmul.f32 %v684, 0.0
    %v687 = vmul.f32 %v683, %v679
    %v688 = vadd.f32 %v686, %v687
    %v689 = vtanh.pop %v688
    %v690 = vmul.f32 %v685, %v689
    %v691 = vmul.f32 %v419, %v690
    %v692 = vadd.f32 %v691, 0.0
    %693 = vmatprep.subr.mxu0 %v467
    %694 = vmatpush1.msra.mxu0 %v466
    %695 = vmatprep.subr.mxu0 %v471
    %696 = vmatpush1.msra.mxu0 %v470
    %697 = vmatprep.subr.mxu0 %v475
    %698 = vmatpush1.msra.mxu0 %v474
    %699 = vmatprep.subr.mxu0 %v479
    %700 = vmatpush1.msra.mxu0 %v478
    %701 = vmatprep.subr.mxu0 %v483
    %702 = vmatpush1.msra.mxu0 %v482
    %703 = vmatprep.subr.mxu0 %v487
    %704 = vmatpush1.msra.mxu0 %v486
    %705 = vmatprep.subr.mxu0 %v491
    %706 = vmatpush1.msra.mxu0 %v490
    %707 = vmatprep.subr.mxu0 %v495
    %708 = vmatpush1.msra.mxu0 %v494
    %709 = vmatprep.subr.mxu0 %v499
    %710 = vmatpush1.msra.mxu0 %v498
    %711 = vmatprep.subr.mxu0 %v503
    %712 = vmatpush1.msra.mxu0 %v502
    %713 = vmatprep.subr.mxu0 %v507
    %714 = vmatpush1.msra.mxu0 %v506
    %715 = vmatprep.subr.mxu0 %v511
    %716 = vmatpush1.msra.mxu0 %v510
    %717 = vmatprep.subr.mxu0 %v515
    %718 = vmatpush1.msra.mxu0 %v514
    %719 = vmatprep.subr.mxu0 %v519
    %720 = vmatpush1.msra.mxu0 %v518
    %721 = vmatprep.subr.mxu0 %v523
    %722 = vmatpush1.msra.mxu0 %v522
    %723 = vmatprep.subr.mxu0 %v527
    %724 = vmatpush1.msra.mxu0 %v526
    %725 = vmatprep.subr.mxu0 0.0
    %726 = vmatpush1.msra.mxu0 0.0
    %727 = vmatprep.subr.mxu0 0.0
    %728 = vmatpush1.msra.mxu0 0.0
    %729 = vmatprep.subr.mxu0 0.0
    %730 = vmatpush1.msra.mxu0 0.0
    %731 = vmatprep.subr.mxu0 0.0
    %732 = vmatpush1.msra.mxu0 0.0
    %733 = vmatprep.subr.mxu0 0.0
    %734 = vmatpush1.msra.mxu0 0.0
    %735 = vmatprep.subr.mxu0 0.0
    %736 = vmatpush1.msra.mxu0 0.0
    %737 = vmatprep.subr.mxu0 0.0
    %738 = vmatpush1.msra.mxu0 0.0
    %739 = vmatprep.subr.mxu0 0.0
    %740 = vmatpush1.msra.mxu0 0.0
    %741 = vmatprep.subr.mxu0 0.0
    %742 = vmatpush1.msra.mxu0 0.0
    %743 = vmatprep.subr.mxu0 0.0
    %744 = vmatpush1.msra.mxu0 0.0
    %745 = vmatprep.subr.mxu0 0.0
    %746 = vmatpush1.msra.mxu0 0.0
    %747 = vmatprep.subr.mxu0 0.0
    %748 = vmatpush1.msra.mxu0 0.0
    %749 = vmatprep.subr.mxu0 0.0
    %750 = vmatpush1.msra.mxu0 0.0
    %751 = vmatprep.subr.mxu0 0.0
    %752 = vmatpush1.msra.mxu0 0.0
    %753 = vmatprep.subr.mxu0 0.0
    %754 = vmatpush1.msra.mxu0 0.0
    %755 = vmatprep.subr.mxu0 0.0
    %756 = vmatpush1.msra.mxu0 0.0
    %757 = vmatprep.mubr.f32.mxu0 0.0
    %758 = vmatmul.mubr.f32.gmra.mrb[0].mxu0 %v690
    %v759 = vpop.f32.mrb[0].mxu0
    %v760 = vadd.f32 0.0, %v759
    %v761 = vpop.f32.mrb[0].mxu0
    %v762 = vadd.f32 0.0, %v761
    %763 = vdwg.mxu0
    %764 = vmatprep.subr.mxu0 %v469
    %765 = vmatpush1.msra.mxu0 %v468
    %766 = vmatprep.subr.mxu0 %v473
    %767 = vmatpush1.msra.mxu0 %v472
    %768 = vmatprep.subr.mxu0 %v477
    %769 = vmatpush1.msra.mxu0 %v476
    %770 = vmatprep.subr.mxu0 %v481
    %771 = vmatpush1.msra.mxu0 %v480
    %772 = vmatprep.subr.mxu0 %v485
    %773 = vmatpush1.msra.mxu0 %v484
    %774 = vmatprep.subr.mxu0 %v489
    %775 = vmatpush1.msra.mxu0 %v488
    %776 = vmatprep.subr.mxu0 %v493
    %777 = vmatpush1.msra.mxu0 %v492
    %778 = vmatprep.subr.mxu0 %v497
    %779 = vmatpush1.msra.mxu0 %v496
    %780 = vmatprep.subr.mxu0 %v501
    %781 = vmatpush1.msra.mxu0 %v500
    %782 = vmatprep.subr.mxu0 %v505
    %783 = vmatpush1.msra.mxu0 %v504
    %784 = vmatprep.subr.mxu0 %v509
    %785 = vmatpush1.msra.mxu0 %v508
    %786 = vmatprep.subr.mxu0 %v513
    %787 = vmatpush1.msra.mxu0 %v512
    %788 = vmatprep.subr.mxu0 %v517
    %789 = vmatpush1.msra.mxu0 %v516
    %790 = vmatprep.subr.mxu0 %v521
    %791 = vmatpush1.msra.mxu0 %v520
    %792 = vmatprep.subr.mxu0 %v525
    %793 = vmatpush1.msra.mxu0 %v524
    %794 = vmatprep.subr.mxu0 %v529
    %795 = vmatpush1.msra.mxu0 %v528
    %796 = vmatprep.subr.mxu0 0.0
    %797 = vmatpush1.msra.mxu0 0.0
    %798 = vmatprep.subr.mxu0 0.0
    %799 = vmatpush1.msra.mxu0 0.0
    %800 = vmatprep.subr.mxu0 0.0
    %801 = vmatpush1.msra.mxu0 0.0
    %802 = vmatprep.subr.mxu0 0.0
    %803 = vmatpush1.msra.mxu0 0.0
    %804 = vmatprep.subr.mxu0 0.0
    %805 = vmatpush1.msra.mxu0 0.0
    %806 = vmatprep.subr.mxu0 0.0
    %807 = vmatpush1.msra.mxu0 0.0
    %808 = vmatprep.subr.mxu0 0.0
    %809 = vmatpush1.msra.mxu0 0.0
    %810 = vmatprep.subr.mxu0 0.0
    %811 = vmatpush1.msra.mxu0 0.0
    %812 = vmatprep.subr.mxu0 0.0
    %813 = vmatpush1.msra.mxu0 0.0
    %814 = vmatprep.subr.mxu0 0.0
    %815 = vmatpush1.msra.mxu0 0.0
    %816 = vmatprep.subr.mxu0 0.0
    %817 = vmatpush1.msra.mxu0 0.0
    %818 = vmatprep.subr.mxu0 0.0
    %819 = vmatpush1.msra.mxu0 0.0
    %820 = vmatprep.subr.mxu0 0.0
    %821 = vmatpush1.msra.mxu0 0.0
    %822 = vmatprep.subr.mxu0 0.0
    %823 = vmatpush1.msra.mxu0 0.0
    %824 = vmatprep.subr.mxu0 0.0
    %825 = vmatpush1.msra.mxu0 0.0
    %826 = vmatprep.subr.mxu0 0.0
    %827 = vmatpush1.msra.mxu0 0.0
    %828 = vmatprep.mubr.f32.mxu0 0.0
    %829 = vmatmul.mubr.f32.gmra.mrb[0].mxu0 %v690
    %v830 = vpop.f32.mrb[0].mxu0
    %v831 = vadd.f32 0.0, %v830
    %v832 = vpop.f32.mrb[0].mxu0
    %v833 = vadd.f32 0.0, %v832
    %834 = vdwg.mxu0
    %v839 = vrot.slane %v760, 4
    %v840 = vrot.slane %v762, 4
    %v841 = vrot.slane %v831, 4
    %v842 = vrot.slane %v833, 4
    %v847 = vadd.f32 %v160, %v839
    %v848 = vadd.f32 %v162, %v840
    %v849 = vadd.f32 %v249, %v841
    %v850 = vadd.f32 %v251, %v842
    %v851 = vtanh.pop %v847
    %v852 = vtanh.pop %v848
    %v853 = vtanh.pop %v849
    %v854 = vtanh.pop %v850
    %v855 = vmul.f32 %v851, 0.5
    %v856 = vmul.f32 %v852, 0.5
    %v857 = vmul.f32 %v853, 0.5
    %v858 = vadd.f32 %v855, 0.5
    %v859 = vadd.f32 %v856, 0.5
    %v860 = vadd.f32 %v857, 0.5
    %v862 = vrot.slane %v688, 4
    %v864 = vmul.f32 %v859, %v862
    %v865 = vmul.f32 %v858, %v854
    %v866 = vadd.f32 %v864, %v865
    %v867 = vtanh.pop %v866
    %v868 = vmul.f32 %v860, %v867
    %v869 = vmul.f32 %v428, %v868
    %v871 = vrot.slane %v869, 4
    %v873 = vadd.f32 %v692, %v871
    %v875 = vrot.slane %v868, 4
    %877 = vmatprep.subr.mxu0 %v467
    %878 = vmatpush1.msra.mxu0 %v466
    %879 = vmatprep.subr.mxu0 %v471
    %880 = vmatpush1.msra.mxu0 %v470
    %881 = vmatprep.subr.mxu0 %v475
    %882 = vmatpush1.msra.mxu0 %v474
    %883 = vmatprep.subr.mxu0 %v479
    %884 = vmatpush1.msra.mxu0 %v478
    %885 = vmatprep.subr.mxu0 %v483
    %886 = vmatpush1.msra.mxu0 %v482
    %887 = vmatprep.subr.mxu0 %v487
    %888 = vmatpush1.msra.mxu0 %v486
    %889 = vmatprep.subr.mxu0 %v491
    %890 = vmatpush1.msra.mxu0 %v490
    %891 = vmatprep.subr.mxu0 %v495
    %892 = vmatpush1.msra.mxu0 %v494
    %893 = vmatprep.subr.mxu0 %v499
    %894 = vmatpush1.msra.mxu0 %v498
    %895 = vmatprep.subr.mxu0 %v503
    %896 = vmatpush1.msra.mxu0 %v502
    %897 = vmatprep.subr.mxu0 %v507
    %898 = vmatpush1.msra.mxu0 %v506
    %899 = vmatprep.subr.mxu0 %v511
    %900 = vmatpush1.msra.mxu0 %v510
    %901 = vmatprep.subr.mxu0 %v515
    %902 = vmatpush1.msra.mxu0 %v514
    %903 = vmatprep.subr.mxu0 %v519
    %904 = vmatpush1.msra.mxu0 %v518
    %905 = vmatprep.subr.mxu0 %v523
    %906 = vmatpush1.msra.mxu0 %v522
    %907 = vmatprep.subr.mxu0 %v527
    %908 = vmatpush1.msra.mxu0 %v526
    %909 = vmatprep.subr.mxu0 0.0
    %910 = vmatpush1.msra.mxu0 0.0
    %911 = vmatprep.subr.mxu0 0.0
    %912 = vmatpush1.msra.mxu0 0.0
    %913 = vmatprep.subr.mxu0 0.0
    %914 = vmatpush1.msra.mxu0 0.0
    %915 = vmatprep.subr.mxu0 0.0
    %916 = vmatpush1.msra.mxu0 0.0
    %917 = vmatprep.subr.mxu0 0.0
    %918 = vmatpush1.msra.mxu0 0.0
    %919 = vmatprep.subr.mxu0 0.0
    %920 = vmatpush1.msra.mxu0 0.0
    %921 = vmatprep.subr.mxu0 0.0
    %922 = vmatpush1.msra.mxu0 0.0
    %923 = vmatprep.subr.mxu0 0.0
    %924 = vmatpush1.msra.mxu0 0.0
    %925 = vmatprep.subr.mxu0 0.0
    %926 = vmatpush1.msra.mxu0 0.0
    %927 = vmatprep.subr.mxu0 0.0
    %928 = vmatpush1.msra.mxu0 0.0
    %929 = vmatprep.subr.mxu0 0.0
    %930 = vmatpush1.msra.mxu0 0.0
    %931 = vmatprep.subr.mxu0 0.0
    %932 = vmatpush1.msra.mxu0 0.0
    %933 = vmatprep.subr.mxu0 0.0
    %934 = vmatpush1.msra.mxu0 0.0
    %935 = vmatprep.subr.mxu0 0.0
    %936 = vmatpush1.msra.mxu0 0.0
    %937 = vmatprep.subr.mxu0 0.0
    %938 = vmatpush1.msra.mxu0 0.0
    %939 = vmatprep.subr.mxu0 0.0
    %940 = vmatpush1.msra.mxu0 0.0
    %941 = vmatprep.mubr.f32.mxu0 0.0
    %942 = vmatmul.mubr.f32.gmra.mrb[0].mxu0 %v875
    %v943 = vpop.f32.mrb[0].mxu0
    %v944 = vadd.f32 0.0, %v943
    %v945 = vpop.f32.mrb[0].mxu0
    %v946 = vadd.f32 0.0, %v945
    %947 = vdwg.mxu0
    %948 = vmatprep.subr.mxu0 %v469
    %949 = vmatpush1.msra.mxu0 %v468
    %950 = vmatprep.subr.mxu0 %v473
    %951 = vmatpush1.msra.mxu0 %v472
    %952 = vmatprep.subr.mxu0 %v477
    %953 = vmatpush1.msra.mxu0 %v476
    %954 = vmatprep.subr.mxu0 %v481
    %955 = vmatpush1.msra.mxu0 %v480
    %956 = vmatprep.subr.mxu0 %v485
    %957 = vmatpush1.msra.mxu0 %v484
    %958 = vmatprep.subr.mxu0 %v489
    %959 = vmatpush1.msra.mxu0 %v488
    %960 = vmatprep.subr.mxu0 %v493
    %961 = vmatpush1.msra.mxu0 %v492
    %962 = vmatprep.subr.mxu0 %v497
    %963 = vmatpush1.msra.mxu0 %v496
    %964 = vmatprep.subr.mxu0 %v501
    %965 = vmatpush1.msra.mxu0 %v500
    %966 = vmatprep.subr.mxu0 %v505
    %967 = vmatpush1.msra.mxu0 %v504
    %968 = vmatprep.subr.mxu0 %v509
    %969 = vmatpush1.msra.mxu0 %v508
    %970 = vmatprep.subr.mxu0 %v513
    %971 = vmatpush1.msra.mxu0 %v512
    %972 = vmatprep.subr.mxu0 %v517
    %973 = vmatpush1.msra.mxu0 %v516
    %974 = vmatprep.subr.mxu0 %v521
    %975 = vmatpush1.msra.mxu0 %v520
    %976 = vmatprep.subr.mxu0 %v525
    %977 = vmatpush1.msra.mxu0 %v524
    %978 = vmatprep.subr.mxu0 %v529
    %979 = vmatpush1.msra.mxu0 %v528
    %980 = vmatprep.subr.mxu0 0.0
    %981 = vmatpush1.msra.mxu0 0.0
    %982 = vmatprep.subr.mxu0 0.0
    %983 = vmatpush1.msra.mxu0 0.0
    %984 = vmatprep.subr.mxu0 0.0
    %985 = vmatpush1.msra.mxu0 0.0
    %986 = vmatprep.subr.mxu0 0.0
    %987 = vmatpush1.msra.mxu0 0.0
    %988 = vmatprep.subr.mxu0 0.0
    %989 = vmatpush1.msra.mxu0 0.0
    %990 = vmatprep.subr.mxu0 0.0
    %991 = vmatpush1.msra.mxu0 0.0
    %992 = vmatprep.subr.mxu0 0.0
    %993 = vmatpush1.msra.mxu0 0.0
    %994 = vmatprep.subr.mxu0 0.0
    %995 = vmatpush1.msra.mxu0 0.0
    %996 = vmatprep.subr.mxu0 0.0
    %997 = vmatpush1.msra.mxu0 0.0
    %998 = vmatprep.subr.mxu0 0.0
    %999 = vmatpush1.msra.mxu0 0.0
    %1000 = vmatprep.subr.mxu0 0.0
    %1001 = vmatpush1.msra.mxu0 0.0
    %1002 = vmatprep.subr.mxu0 0.0
    %1003 = vmatpush1.msra.mxu0 0.0
    %1004 = vmatprep.subr.mxu0 0.0
    %1005 = vmatpush1.msra.mxu0 0.0
    %1006 = vmatprep.subr.mxu0 0.0
    %1007 = vmatpush1.msra.mxu0 0.0
    %1008 = vmatprep.subr.mxu0 0.0
    %1009 = vmatpush1.msra.mxu0 0.0
    %1010 = vmatprep.subr.mxu0 0.0
    %1011 = vmatpush1.msra.mxu0 0.0
    %1012 = vmatprep.mubr.f32.mxu0 0.0
    %1013 = vmatmul.mubr.f32.gmra.mrb[0].mxu0 %v875
    %v1014 = vpop.f32.mrb[0].mxu0
    %v1015 = vadd.f32 0.0, %v1014
    %v1016 = vpop.f32.mrb[0].mxu0
    %v1017 = vadd.f32 0.0, %v1016
    %1018 = vdwg.mxu0
    %v1019 = vadd.f32 %v166, %v944
    %v1020 = vadd.f32 %v168, %v946
    %v1021 = vadd.f32 %v255, %v1015
    %v1022 = vadd.f32 %v257, %v1017
    %v1023 = vtanh.pop %v1019
    %v1024 = vtanh.pop %v1020
    %v1025 = vtanh.pop %v1021
    %v1026 = vtanh.pop %v1022
    %v1027 = vmul.f32 %v1023, 0.5
    %v1028 = vmul.f32 %v1024, 0.5
    %v1029 = vmul.f32 %v1025, 0.5
    %v1030 = vadd.f32 %v1027, 0.5
    %v1031 = vadd.f32 %v1028, 0.5
    %v1032 = vadd.f32 %v1029, 0.5
    %v1034 = vrot.slane %v866, 4
    %v1036 = vmul.f32 %v1031, %v1034
    %v1037 = vmul.f32 %v1030, %v1026
    %v1038 = vadd.f32 %v1036, %v1037
    %v1039 = vtanh.pop %v1038
    %v1040 = vmul.f32 %v1032, %v1039
    %v1041 = vmul.f32 %v434, %v1040
    %v1042 = vadd.f32 %v873, %v1041
    %1043 = vmatprep.subr.mxu0 %v467
    %1044 = vmatpush1.msra.mxu0 %v466
    %1045 = vmatprep.subr.mxu0 %v471
    %1046 = vmatpush1.msra.mxu0 %v470
    %1047 = vmatprep.subr.mxu0 %v475
    %1048 = vmatpush1.msra.mxu0 %v474
    %1049 = vmatprep.subr.mxu0 %v479
    %1050 = vmatpush1.msra.mxu0 %v478
    %1051 = vmatprep.subr.mxu0 %v483
    %1052 = vmatpush1.msra.mxu0 %v482
    %1053 = vmatprep.subr.mxu0 %v487
    %1054 = vmatpush1.msra.mxu0 %v486
    %1055 = vmatprep.subr.mxu0 %v491
    %1056 = vmatpush1.msra.mxu0 %v490
    %1057 = vmatprep.subr.mxu0 %v495
    %1058 = vmatpush1.msra.mxu0 %v494
    %1059 = vmatprep.subr.mxu0 %v499
    %1060 = vmatpush1.msra.mxu0 %v498
    %1061 = vmatprep.subr.mxu0 %v503
    %1062 = vmatpush1.msra.mxu0 %v502
    %1063 = vmatprep.subr.mxu0 %v507
    %1064 = vmatpush1.msra.mxu0 %v506
    %1065 = vmatprep.subr.mxu0 %v511
    %1066 = vmatpush1.msra.mxu0 %v510
    %1067 = vmatprep.subr.mxu0 %v515
    %1068 = vmatpush1.msra.mxu0 %v514
    %1069 = vmatprep.subr.mxu0 %v519
    %1070 = vmatpush1.msra.mxu0 %v518
    %1071 = vmatprep.subr.mxu0 %v523
    %1072 = vmatpush1.msra.mxu0 %v522
    %1073 = vmatprep.subr.mxu0 %v527
    %1074 = vmatpush1.msra.mxu0 %v526
    %1075 = vmatprep.subr.mxu0 0.0
    %1076 = vmatpush1.msra.mxu0 0.0
    %1077 = vmatprep.subr.mxu0 0.0
    %1078 = vmatpush1.msra.mxu0 0.0
    %1079 = vmatprep.subr.mxu0 0.0
    %1080 = vmatpush1.msra.mxu0 0.0
    %1081 = vmatprep.subr.mxu0 0.0
    %1082 = vmatpush1.msra.mxu0 0.0
    %1083 = vmatprep.subr.mxu0 0.0
    %1084 = vmatpush1.msra.mxu0 0.0
    %1085 = vmatprep.subr.mxu0 0.0
    %1086 = vmatpush1.msra.mxu0 0.0
    %1087 = vmatprep.subr.mxu0 0.0
    %1088 = vmatpush1.msra.mxu0 0.0
    %1089 = vmatprep.subr.mxu0 0.0
    %1090 = vmatpush1.msra.mxu0 0.0
    %1091 = vmatprep.subr.mxu0 0.0
    %1092 = vmatpush1.msra.mxu0 0.0
    %1093 = vmatprep.subr.mxu0 0.0
    %1094 = vmatpush1.msra.mxu0 0.0
    %1095 = vmatprep.subr.mxu0 0.0
    %1096 = vmatpush1.msra.mxu0 0.0
    %1097 = vmatprep.subr.mxu0 0.0
    %1098 = vmatpush1.msra.mxu0 0.0
    %1099 = vmatprep.subr.mxu0 0.0
    %1100 = vmatpush1.msra.mxu0 0.0
    %1101 = vmatprep.subr.mxu0 0.0
    %1102 = vmatpush1.msra.mxu0 0.0
    %1103 = vmatprep.subr.mxu0 0.0
    %1104 = vmatpush1.msra.mxu0 0.0
    %1105 = vmatprep.subr.mxu0 0.0
    %1106 = vmatpush1.msra.mxu0 0.0
    %1107 = vmatprep.mubr.f32.mxu0 0.0
    %1108 = vmatmul.mubr.f32.gmra.mrb[0].mxu0 %v1040
    %v1109 = vpop.f32.mrb[0].mxu0
    %v1110 = vadd.f32 0.0, %v1109
    %v1111 = vpop.f32.mrb[0].mxu0
    %v1112 = vadd.f32 0.0, %v1111
    %1113 = vdwg.mxu0
    %1114 = vmatprep.subr.mxu0 %v469
    %1115 = vmatpush1.msra.mxu0 %v468
    %1116 = vmatprep.subr.mxu0 %v473
    %1117 = vmatpush1.msra.mxu0 %v472
    %1118 = vmatprep.subr.mxu0 %v477
    %1119 = vmatpush1.msra.mxu0 %v476
    %1120 = vmatprep.subr.mxu0 %v481
    %1121 = vmatpush1.msra.mxu0 %v480
    %1122 = vmatprep.subr.mxu0 %v485
    %1123 = vmatpush1.msra.mxu0 %v484
    %1124 = vmatprep.subr.mxu0 %v489
    %1125 = vmatpush1.msra.mxu0 %v488
    %1126 = vmatprep.subr.mxu0 %v493
    %1127 = vmatpush1.msra.mxu0 %v492
    %1128 = vmatprep.subr.mxu0 %v497
    %1129 = vmatpush1.msra.mxu0 %v496
    %1130 = vmatprep.subr.mxu0 %v501
    %1131 = vmatpush1.msra.mxu0 %v500
    %1132 = vmatprep.subr.mxu0 %v505
    %1133 = vmatpush1.msra.mxu0 %v504
    %1134 = vmatprep.subr.mxu0 %v509
    %1135 = vmatpush1.msra.mxu0 %v508
    %1136 = vmatprep.subr.mxu0 %v513
    %1137 = vmatpush1.msra.mxu0 %v512
    %1138 = vmatprep.subr.mxu0 %v517
    %1139 = vmatpush1.msra.mxu0 %v516
    %1140 = vmatprep.subr.mxu0 %v521
    %1141 = vmatpush1.msra.mxu0 %v520
    %1142 = vmatprep.subr.mxu0 %v525
    %1143 = vmatpush1.msra.mxu0 %v524
    %1144 = vmatprep.subr.mxu0 %v529
    %1145 = vmatpush1.msra.mxu0 %v528
    %1146 = vmatprep.subr.mxu0 0.0
    %1147 = vmatpush1.msra.mxu0 0.0
    %1148 = vmatprep.subr.mxu0 0.0
    %1149 = vmatpush1.msra.mxu0 0.0
    %1150 = vmatprep.subr.mxu0 0.0
    %1151 = vmatpush1.msra.mxu0 0.0
    %1152 = vmatprep.subr.mxu0 0.0
    %1153 = vmatpush1.msra.mxu0 0.0
    %1154 = vmatprep.subr.mxu0 0.0
    %1155 = vmatpush1.msra.mxu0 0.0
    %1156 = vmatprep.subr.mxu0 0.0
    %1157 = vmatpush1.msra.mxu0 0.0
    %1158 = vmatprep.subr.mxu0 0.0
    %1159 = vmatpush1.msra.mxu0 0.0
    %1160 = vmatprep.subr.mxu0 0.0
    %1161 = vmatpush1.msra.mxu0 0.0
    %1162 = vmatprep.subr.mxu0 0.0
    %1163 = vmatpush1.msra.mxu0 0.0
    %1164 = vmatprep.subr.mxu0 0.0
    %1165 = vmatpush1.msra.mxu0 0.0
    %1166 = vmatprep.subr.mxu0 0.0
    %1167 = vmatpush1.msra.mxu0 0.0
    %1168 = vmatprep.subr.mxu0 0.0
    %1169 = vmatpush1.msra.mxu0 0.0
    %1170 = vmatprep.subr.mxu0 0.0
    %1171 = vmatpush1.msra.mxu0 0.0
    %1172 = vmatprep.subr.mxu0 0.0
    %1173 = vmatpush1.msra.mxu0 0.0
    %1174 = vmatprep.subr.mxu0 0.0
    %1175 = vmatpush1.msra.mxu0 0.0
    %1176 = vmatprep.subr.mxu0 0.0
    %1177 = vmatpush1.msra.mxu0 0.0
    %1178 = vmatprep.mubr.f32.mxu0 0.0
    %1179 = vmatmul.mubr.f32.gmra.mrb[0].mxu0 %v1040
    %v1180 = vpop.f32.mrb[0].mxu0
    %v1181 = vadd.f32 0.0, %v1180
    %v1182 = vpop.f32.mrb[0].mxu0
    %v1183 = vadd.f32 0.0, %v1182
    %1184 = vdwg.mxu0
    %v1189 = vrot.slane %v1110, 4
    %v1190 = vrot.slane %v1112, 4
    %v1191 = vrot.slane %v1181, 4
    %v1192 = vrot.slane %v1183, 4
    %v1197 = vadd.f32 %v166, %v1189
    %v1198 = vadd.f32 %v168, %v1190
    %v1199 = vadd.f32 %v255, %v1191
    %v1200 = vadd.f32 %v257, %v1192
    %v1201 = vtanh.pop %v1197
    %v1202 = vtanh.pop %v1198
    %v1203 = vtanh.pop %v1199
    %v1204 = vtanh.pop %v1200
    %v1205 = vmul.f32 %v1201, 0.5
    %v1206 = vmul.f32 %v1202, 0.5
    %v1207 = vmul.f32 %v1203, 0.5
    %v1208 = vadd.f32 %v1205, 0.5
    %v1209 = vadd.f32 %v1206, 0.5
    %v1210 = vadd.f32 %v1207, 0.5
    %v1212 = vrot.slane %v1038, 4
    %v1214 = vmul.f32 %v1209, %v1212
    %v1215 = vmul.f32 %v1208, %v1204
    %v1216 = vadd.f32 %v1214, %v1215
    %v1217 = vtanh.pop %v1216
    %v1218 = vmul.f32 %v1210, %v1217
    %v1219 = vmul.f32 %v440, %v1218
    %v1221 = vrot.slane %v1219, 4
    %v1223 = vadd.f32 %v1042, %v1221
    %v1225 = vrot.slane %v1218, 4
    %1227 = vmatprep.subr.mxu0 %v467
    %1228 = vmatpush1.msra.mxu0 %v466
    %1229 = vmatprep.subr.mxu0 %v471
    %1230 = vmatpush1.msra.mxu0 %v470
    %1231 = vmatprep.subr.mxu0 %v475
    %1232 = vmatpush1.msra.mxu0 %v474
    %1233 = vmatprep.subr.mxu0 %v479
    %1234 = vmatpush1.msra.mxu0 %v478
    %1235 = vmatprep.subr.mxu0 %v483
    %1236 = vmatpush1.msra.mxu0 %v482
    %1237 = vmatprep.subr.mxu0 %v487
    %1238 = vmatpush1.msra.mxu0 %v486
    %1239 = vmatprep.subr.mxu0 %v491
    %1240 = vmatpush1.msra.mxu0 %v490
    %1241 = vmatprep.subr.mxu0 %v495
    %1242 = vmatpush1.msra.mxu0 %v494
    %1243 = vmatprep.subr.mxu0 %v499
    %1244 = vmatpush1.msra.mxu0 %v498
    %1245 = vmatprep.subr.mxu0 %v503
    %1246 = vmatpush1.msra.mxu0 %v502
    %1247 = vmatprep.subr.mxu0 %v507
    %1248 = vmatpush1.msra.mxu0 %v506
    %1249 = vmatprep.subr.mxu0 %v511
    %1250 = vmatpush1.msra.mxu0 %v510
    %1251 = vmatprep.subr.mxu0 %v515
    %1252 = vmatpush1.msra.mxu0 %v514
    %1253 = vmatprep.subr.mxu0 %v519
    %1254 = vmatpush1.msra.mxu0 %v518
    %1255 = vmatprep.subr.mxu0 %v523
    %1256 = vmatpush1.msra.mxu0 %v522
    %1257 = vmatprep.subr.mxu0 %v527
    %1258 = vmatpush1.msra.mxu0 %v526
    %1259 = vmatprep.subr.mxu0 0.0
    %1260 = vmatpush1.msra.mxu0 0.0
    %1261 = vmatprep.subr.mxu0 0.0
    %1262 = vmatpush1.msra.mxu0 0.0
    %1263 = vmatprep.subr.mxu0 0.0
    %1264 = vmatpush1.msra.mxu0 0.0
    %1265 = vmatprep.subr.mxu0 0.0
    %1266 = vmatpush1.msra.mxu0 0.0
    %1267 = vmatprep.subr.mxu0 0.0
    %1268 = vmatpush1.msra.mxu0 0.0
    %1269 = vmatprep.subr.mxu0 0.0
    %1270 = vmatpush1.msra.mxu0 0.0
    %1271 = vmatprep.subr.mxu0 0.0
    %1272 = vmatpush1.msra.mxu0 0.0
    %1273 = vmatprep.subr.mxu0 0.0
    %1274 = vmatpush1.msra.mxu0 0.0
    %1275 = vmatprep.subr.mxu0 0.0
    %1276 = vmatpush1.msra.mxu0 0.0
    %1277 = vmatprep.subr.mxu0 0.0
    %1278 = vmatpush1.msra.mxu0 0.0
    %1279 = vmatprep.subr.mxu0 0.0
    %1280 = vmatpush1.msra.mxu0 0.0
    %1281 = vmatprep.subr.mxu0 0.0
    %1282 = vmatpush1.msra.mxu0 0.0
    %1283 = vmatprep.subr.mxu0 0.0
    %1284 = vmatpush1.msra.mxu0 0.0
    %1285 = vmatprep.subr.mxu0 0.0
    %1286 = vmatpush1.msra.mxu0 0.0
    %1287 = vmatprep.subr.mxu0 0.0
    %1288 = vmatpush1.msra.mxu0 0.0
    %1289 = vmatprep.subr.mxu0 0.0
    %1290 = vmatpush1.msra.mxu0 0.0
    %1291 = vmatprep.mubr.f32.mxu0 0.0
    %1292 = vmatmul.mubr.f32.gmra.mrb[0].mxu0 %v1225
    %v1293 = vpop.f32.mrb[0].mxu0
    %v1294 = vadd.f32 0.0, %v1293
    %v1295 = vpop.f32.mrb[0].mxu0
    %v1296 = vadd.f32 0.0, %v1295
    %1297 = vdwg.mxu0
    %1298 = vmatprep.subr.mxu0 %v469
    %1299 = vmatpush1.msra.mxu0 %v468
    %1300 = vmatprep.subr.mxu0 %v473
    %1301 = vmatpush1.msra.mxu0 %v472
    %1302 = vmatprep.subr.mxu0 %v477
    %1303 = vmatpush1.msra.mxu0 %v476
    %1304 = vmatprep.subr.mxu0 %v481
    %1305 = vmatpush1.msra.mxu0 %v480
    %1306 = vmatprep.subr.mxu0 %v485
    %1307 = vmatpush1.msra.mxu0 %v484
    %1308 = vmatprep.subr.mxu0 %v489
    %1309 = vmatpush1.msra.mxu0 %v488
    %1310 = vmatprep.subr.mxu0 %v493
    %1311 = vmatpush1.msra.mxu0 %v492
    %1312 = vmatprep.subr.mxu0 %v497
    %1313 = vmatpush1.msra.mxu0 %v496
    %1314 = vmatprep.subr.mxu0 %v501
    %1315 = vmatpush1.msra.mxu0 %v500
    %1316 = vmatprep.subr.mxu0 %v505
    %1317 = vmatpush1.msra.mxu0 %v504
    %1318 = vmatprep.subr.mxu0 %v509
    %1319 = vmatpush1.msra.mxu0 %v508
    %1320 = vmatprep.subr.mxu0 %v513
    %1321 = vmatpush1.msra.mxu0 %v512
    %1322 = vmatprep.subr.mxu0 %v517
    %1323 = vmatpush1.msra.mxu0 %v516
    %1324 = vmatprep.subr.mxu0 %v521
    %1325 = vmatpush1.msra.mxu0 %v520
    %1326 = vmatprep.subr.mxu0 %v525
    %1327 = vmatpush1.msra.mxu0 %v524
    %1328 = vmatprep.subr.mxu0 %v529
    %1329 = vmatpush1.msra.mxu0 %v528
    %1330 = vmatprep.subr.mxu0 0.0
    %1331 = vmatpush1.msra.mxu0 0.0
    %1332 = vmatprep.subr.mxu0 0.0
    %1333 = vmatpush1.msra.mxu0 0.0
    %1334 = vmatprep.subr.mxu0 0.0
    %1335 = vmatpush1.msra.mxu0 0.0
    %1336 = vmatprep.subr.mxu0 0.0
    %1337 = vmatpush1.msra.mxu0 0.0
    %1338 = vmatprep.subr.mxu0 0.0
    %1339 = vmatpush1.msra.mxu0 0.0
    %1340 = vmatprep.subr.mxu0 0.0
    %1341 = vmatpush1.msra.mxu0 0.0
    %1342 = vmatprep.subr.mxu0 0.0
    %1343 = vmatpush1.msra.mxu0 0.0
    %1344 = vmatprep.subr.mxu0 0.0
    %1345 = vmatpush1.msra.mxu0 0.0
    %1346 = vmatprep.subr.mxu0 0.0
    %1347 = vmatpush1.msra.mxu0 0.0
    %1348 = vmatprep.subr.mxu0 0.0
    %1349 = vmatpush1.msra.mxu0 0.0
    %1350 = vmatprep.subr.mxu0 0.0
    %1351 = vmatpush1.msra.mxu0 0.0
    %1352 = vmatprep.subr.mxu0 0.0
    %1353 = vmatpush1.msra.mxu0 0.0
    %1354 = vmatprep.subr.mxu0 0.0
    %1355 = vmatpush1.msra.mxu0 0.0
    %1356 = vmatprep.subr.mxu0 0.0
    %1357 = vmatpush1.msra.mxu0 0.0
    %1358 = vmatprep.subr.mxu0 0.0
    %1359 = vmatpush1.msra.mxu0 0.0
    %1360 = vmatprep.subr.mxu0 0.0
    %1361 = vmatpush1.msra.mxu0 0.0
    %1362 = vmatprep.mubr.f32.mxu0 0.0
    %1363 = vmatmul.mubr.f32.gmra.mrb[0].mxu0 %v1225
    %v1364 = vpop.f32.mrb[0].mxu0
    %v1365 = vadd.f32 0.0, %v1364
    %v1366 = vpop.f32.mrb[0].mxu0
    %v1367 = vadd.f32 0.0, %v1366
    %1368 = vdwg.mxu0
    %v1369 = vadd.f32 %v172, %v1294
    %v1370 = vadd.f32 %v174, %v1296
    %v1371 = vadd.f32 %v261, %v1365
    %v1372 = vadd.f32 %v263, %v1367
    %v1373 = vtanh.pop %v1369
    %v1374 = vtanh.pop %v1370
    %v1375 = vtanh.pop %v1371
    %v1376 = vtanh.pop %v1372
    %v1377 = vmul.f32 %v1373, 0.5
    %v1378 = vmul.f32 %v1374, 0.5
    %v1379 = vmul.f32 %v1375, 0.5
    %v1380 = vadd.f32 %v1377, 0.5
    %v1381 = vadd.f32 %v1378, 0.5
    %v1382 = vadd.f32 %v1379, 0.5
    %v1384 = vrot.slane %v1216, 4
    %v1386 = vmul.f32 %v1381, %v1384
    %v1387 = vmul.f32 %v1380, %v1376
    %v1388 = vadd.f32 %v1386, %v1387
    %v1389 = vtanh.pop %v1388
    %v1390 = vmul.f32 %v1382, %v1389
    %v1391 = vmul.f32 %v446, %v1390
    %v1392 = vadd.f32 %v1223, %v1391
    %1393 = vmatprep.subr.mxu0 %v467
    %1394 = vmatpush1.msra.mxu0 %v466
    %1395 = vmatprep.subr.mxu0 %v471
    %1396 = vmatpush1.msra.mxu0 %v470
    %1397 = vmatprep.subr.mxu0 %v475
    %1398 = vmatpush1.msra.mxu0 %v474
    %1399 = vmatprep.subr.mxu0 %v479
    %1400 = vmatpush1.msra.mxu0 %v478
    %1401 = vmatprep.subr.mxu0 %v483
    %1402 = vmatpush1.msra.mxu0 %v482
    %1403 = vmatprep.subr.mxu0 %v487
    %1404 = vmatpush1.msra.mxu0 %v486
    %1405 = vmatprep.subr.mxu0 %v491
    %1406 = vmatpush1.msra.mxu0 %v490
    %1407 = vmatprep.subr.mxu0 %v495
    %1408 = vmatpush1.msra.mxu0 %v494
    %1409 = vmatprep.subr.mxu0 %v499
    %1410 = vmatpush1.msra.mxu0 %v498
    %1411 = vmatprep.subr.mxu0 %v503
    %1412 = vmatpush1.msra.mxu0 %v502
    %1413 = vmatprep.subr.mxu0 %v507
    %1414 = vmatpush1.msra.mxu0 %v506
    %1415 = vmatprep.subr.mxu0 %v511
    %1416 = vmatpush1.msra.mxu0 %v510
    %1417 = vmatprep.subr.mxu0 %v515
    %1418 = vmatpush1.msra.mxu0 %v514
    %1419 = vmatprep.subr.mxu0 %v519
    %1420 = vmatpush1.msra.mxu0 %v518
    %1421 = vmatprep.subr.mxu0 %v523
    %1422 = vmatpush1.msra.mxu0 %v522
    %1423 = vmatprep.subr.mxu0 %v527
    %1424 = vmatpush1.msra.mxu0 %v526
    %1425 = vmatprep.subr.mxu0 0.0
    %1426 = vmatpush1.msra.mxu0 0.0
    %1427 = vmatprep.subr.mxu0 0.0
    %1428 = vmatpush1.msra.mxu0 0.0
    %1429 = vmatprep.subr.mxu0 0.0
    %1430 = vmatpush1.msra.mxu0 0.0
    %1431 = vmatprep.subr.mxu0 0.0
    %1432 = vmatpush1.msra.mxu0 0.0
    %1433 = vmatprep.subr.mxu0 0.0
    %1434 = vmatpush1.msra.mxu0 0.0
    %1435 = vmatprep.subr.mxu0 0.0
    %1436 = vmatpush1.msra.mxu0 0.0
    %1437 = vmatprep.subr.mxu0 0.0
    %1438 = vmatpush1.msra.mxu0 0.0
    %1439 = vmatprep.subr.mxu0 0.0
    %1440 = vmatpush1.msra.mxu0 0.0
    %1441 = vmatprep.subr.mxu0 0.0
    %1442 = vmatpush1.msra.mxu0 0.0
    %1443 = vmatprep.subr.mxu0 0.0
    %1444 = vmatpush1.msra.mxu0 0.0
    %1445 = vmatprep.subr.mxu0 0.0
    %1446 = vmatpush1.msra.mxu0 0.0
    %1447 = vmatprep.subr.mxu0 0.0
    %1448 = vmatpush1.msra.mxu0 0.0
    %1449 = vmatprep.subr.mxu0 0.0
    %1450 = vmatpush1.msra.mxu0 0.0
    %1451 = vmatprep.subr.mxu0 0.0
    %1452 = vmatpush1.msra.mxu0 0.0
    %1453 = vmatprep.subr.mxu0 0.0
    %1454 = vmatpush1.msra.mxu0 0.0
    %1455 = vmatprep.subr.mxu0 0.0
    %1456 = vmatpush1.msra.mxu0 0.0
    %1457 = vmatprep.mubr.f32.mxu0 0.0
    %1458 = vmatmul.mubr.f32.gmra.mrb[0].mxu0 %v1390
    %v1459 = vpop.f32.mrb[0].mxu0
    %v1460 = vadd.f32 0.0, %v1459
    %v1461 = vpop.f32.mrb[0].mxu0
    %v1462 = vadd.f32 0.0, %v1461
    %1463 = vdwg.mxu0
    %1464 = vmatprep.subr.mxu0 %v469
    %1465 = vmatpush1.msra.mxu0 %v468
    %1466 = vmatprep.subr.mxu0 %v473
    %1467 = vmatpush1.msra.mxu0 %v472
    %1468 = vmatprep.subr.mxu0 %v477
    %1469 = vmatpush1.msra.mxu0 %v476
    %1470 = vmatprep.subr.mxu0 %v481
    %1471 = vmatpush1.msra.mxu0 %v480
    %1472 = vmatprep.subr.mxu0 %v485
    %1473 = vmatpush1.msra.mxu0 %v484
    %1474 = vmatprep.subr.mxu0 %v489
    %1475 = vmatpush1.msra.mxu0 %v488
    %1476 = vmatprep.subr.mxu0 %v493
    %1477 = vmatpush1.msra.mxu0 %v492
    %1478 = vmatprep.subr.mxu0 %v497
    %1479 = vmatpush1.msra.mxu0 %v496
    %1480 = vmatprep.subr.mxu0 %v501
    %1481 = vmatpush1.msra.mxu0 %v500
    %1482 = vmatprep.subr.mxu0 %v505
    %1483 = vmatpush1.msra.mxu0 %v504
    %1484 = vmatprep.subr.mxu0 %v509
    %1485 = vmatpush1.msra.mxu0 %v508
    %1486 = vmatprep.subr.mxu0 %v513
    %1487 = vmatpush1.msra.mxu0 %v512
    %1488 = vmatprep.subr.mxu0 %v517
    %1489 = vmatpush1.msra.mxu0 %v516
    %1490 = vmatprep.subr.mxu0 %v521
    %1491 = vmatpush1.msra.mxu0 %v520
    %1492 = vmatprep.subr.mxu0 %v525
    %1493 = vmatpush1.msra.mxu0 %v524
    %1494 = vmatprep.subr.mxu0 %v529
    %1495 = vmatpush1.msra.mxu0 %v528
    %1496 = vmatprep.subr.mxu0 0.0
    %1497 = vmatpush1.msra.mxu0 0.0
    %1498 = vmatprep.subr.mxu0 0.0
    %1499 = vmatpush1.msra.mxu0 0.0
    %1500 = vmatprep.subr.mxu0 0.0
    %1501 = vmatpush1.msra.mxu0 0.0
    %1502 = vmatprep.subr.mxu0 0.0
    %1503 = vmatpush1.msra.mxu0 0.0
    %1504 = vmatprep.subr.mxu0 0.0
    %1505 = vmatpush1.msra.mxu0 0.0
    %1506 = vmatprep.subr.mxu0 0.0
    %1507 = vmatpush1.msra.mxu0 0.0
    %1508 = vmatprep.subr.mxu0 0.0
    %1509 = vmatpush1.msra.mxu0 0.0
    %1510 = vmatprep.subr.mxu0 0.0
    %1511 = vmatpush1.msra.mxu0 0.0
    %1512 = vmatprep.subr.mxu0 0.0
    %1513 = vmatpush1.msra.mxu0 0.0
    %1514 = vmatprep.subr.mxu0 0.0
    %1515 = vmatpush1.msra.mxu0 0.0
    %1516 = vmatprep.subr.mxu0 0.0
    %1517 = vmatpush1.msra.mxu0 0.0
    %1518 = vmatprep.subr.mxu0 0.0
    %1519 = vmatpush1.msra.mxu0 0.0
    %1520 = vmatprep.subr.mxu0 0.0
    %1521 = vmatpush1.msra.mxu0 0.0
    %1522 = vmatprep.subr.mxu0 0.0
    %1523 = vmatpush1.msra.mxu0 0.0
    %1524 = vmatprep.subr.mxu0 0.0
    %1525 = vmatpush1.msra.mxu0 0.0
    %1526 = vmatprep.subr.mxu0 0.0
    %1527 = vmatpush1.msra.mxu0 0.0
    %1528 = vmatprep.mubr.f32.mxu0 0.0
    %1529 = vmatmul.mubr.f32.gmra.mrb[0].mxu0 %v1390
    %v1530 = vpop.f32.mrb[0].mxu0
    %v1531 = vadd.f32 0.0, %v1530
    %v1532 = vpop.f32.mrb[0].mxu0
    %v1533 = vadd.f32 0.0, %v1532
    %1534 = vdwg.mxu0
    %v1539 = vrot.slane %v1460, 4
    %v1540 = vrot.slane %v1462, 4
    %v1541 = vrot.slane %v1531, 4
    %v1542 = vrot.slane %v1533, 4
    %v1547 = vadd.f32 %v172, %v1539
    %v1548 = vadd.f32 %v174, %v1540
    %v1549 = vadd.f32 %v261, %v1541
    %v1550 = vadd.f32 %v263, %v1542
    %v1551 = vtanh.pop %v1547
    %v1552 = vtanh.pop %v1548
    %v1553 = vtanh.pop %v1549
    %v1554 = vtanh.pop %v1550
    %v1555 = vmul.f32 %v1551, 0.5
    %v1556 = vmul.f32 %v1552, 0.5
    %v1557 = vmul.f32 %v1553, 0.5
    %v1558 = vadd.f32 %v1555, 0.5
    %v1559 = vadd.f32 %v1556, 0.5
    %v1560 = vadd.f32 %v1557, 0.5
    %v1562 = vrot.slane %v1388, 4
    %v1564 = vmul.f32 %v1559, %v1562
    %v1565 = vmul.f32 %v1558, %v1554
    %v1566 = vadd.f32 %v1564, %v1565
    %v1567 = vtanh.pop %v1566
    %v1568 = vmul.f32 %v1560, %v1567
    %v1569 = vmul.f32 %v452, %v1568
    %v1571 = vrot.slane %v1569, 4
    %v1573 = vadd.f32 %v1392, %v1571
    %v1575 = vrot.slane %v1568, 4
    %1577 = vmatprep.subr.mxu0 %v467
    %1578 = vmatpush1.msra.mxu0 %v466
    %1579 = vmatprep.subr.mxu0 %v471
    %1580 = vmatpush1.msra.mxu0 %v470
    %1581 = vmatprep.subr.mxu0 %v475
    %1582 = vmatpush1.msra.mxu0 %v474
    %1583 = vmatprep.subr.mxu0 %v479
    %1584 = vmatpush1.msra.mxu0 %v478
    %1585 = vmatprep.subr.mxu0 %v483
    %1586 = vmatpush1.msra.mxu0 %v482
    %1587 = vmatprep.subr.mxu0 %v487
    %1588 = vmatpush1.msra.mxu0 %v486
    %1589 = vmatprep.subr.mxu0 %v491
    %1590 = vmatpush1.msra.mxu0 %v490
    %1591 = vmatprep.subr.mxu0 %v495
    %1592 = vmatpush1.msra.mxu0 %v494
    %1593 = vmatprep.subr.mxu0 %v499
    %1594 = vmatpush1.msra.mxu0 %v498
    %1595 = vmatprep.subr.mxu0 %v503
    %1596 = vmatpush1.msra.mxu0 %v502
    %1597 = vmatprep.subr.mxu0 %v507
    %1598 = vmatpush1.msra.mxu0 %v506
    %1599 = vmatprep.subr.mxu0 %v511
    %1600 = vmatpush1.msra.mxu0 %v510
    %1601 = vmatprep.subr.mxu0 %v515
    %1602 = vmatpush1.msra.mxu0 %v514
    %1603 = vmatprep.subr.mxu0 %v519
    %1604 = vmatpush1.msra.mxu0 %v518
    %1605 = vmatprep.subr.mxu0 %v523
    %1606 = vmatpush1.msra.mxu0 %v522
    %1607 = vmatprep.subr.mxu0 %v527
    %1608 = vmatpush1.msra.mxu0 %v526
    %1609 = vmatprep.subr.mxu0 0.0
    %1610 = vmatpush1.msra.mxu0 0.0
    %1611 = vmatprep.subr.mxu0 0.0
    %1612 = vmatpush1.msra.mxu0 0.0
    %1613 = vmatprep.subr.mxu0 0.0
    %1614 = vmatpush1.msra.mxu0 0.0
    %1615 = vmatprep.subr.mxu0 0.0
    %1616 = vmatpush1.msra.mxu0 0.0
    %1617 = vmatprep.subr.mxu0 0.0
    %1618 = vmatpush1.msra.mxu0 0.0
    %1619 = vmatprep.subr.mxu0 0.0
    %1620 = vmatpush1.msra.mxu0 0.0
    %1621 = vmatprep.subr.mxu0 0.0
    %1622 = vmatpush1.msra.mxu0 0.0
    %1623 = vmatprep.subr.mxu0 0.0
    %1624 = vmatpush1.msra.mxu0 0.0
    %1625 = vmatprep.subr.mxu0 0.0
    %1626 = vmatpush1.msra.mxu0 0.0
    %1627 = vmatprep.subr.mxu0 0.0
    %1628 = vmatpush1.msra.mxu0 0.0
    %1629 = vmatprep.subr.mxu0 0.0
    %1630 = vmatpush1.msra.mxu0 0.0
    %1631 = vmatprep.subr.mxu0 0.0
    %1632 = vmatpush1.msra.mxu0 0.0
    %1633 = vmatprep.subr.mxu0 0.0
    %1634 = vmatpush1.msra.mxu0 0.0
    %1635 = vmatprep.subr.mxu0 0.0
    %1636 = vmatpush1.msra.mxu0 0.0
    %1637 = vmatprep.subr.mxu0 0.0
    %1638 = vmatpush1.msra.mxu0 0.0
    %1639 = vmatprep.subr.mxu0 0.0
    %1640 = vmatpush1.msra.mxu0 0.0
    %1641 = vmatprep.mubr.f32.mxu0 0.0
    %1642 = vmatmul.mubr.f32.gmra.mrb[0].mxu0 %v1575
    %v1643 = vpop.f32.mrb[0].mxu0
    %v1644 = vadd.f32 0.0, %v1643
    %v1645 = vpop.f32.mrb[0].mxu0
    %v1646 = vadd.f32 0.0, %v1645
    %1647 = vdwg.mxu0
    %1648 = vmatprep.subr.mxu0 %v469
    %1649 = vmatpush1.msra.mxu0 %v468
    %1650 = vmatprep.subr.mxu0 %v473
    %1651 = vmatpush1.msra.mxu0 %v472
    %1652 = vmatprep.subr.mxu0 %v477
    %1653 = vmatpush1.msra.mxu0 %v476
    %1654 = vmatprep.subr.mxu0 %v481
    %1655 = vmatpush1.msra.mxu0 %v480
    %1656 = vmatprep.subr.mxu0 %v485
    %1657 = vmatpush1.msra.mxu0 %v484
    %1658 = vmatprep.subr.mxu0 %v489
    %1659 = vmatpush1.msra.mxu0 %v488
    %1660 = vmatprep.subr.mxu0 %v493
    %1661 = vmatpush1.msra.mxu0 %v492
    %1662 = vmatprep.subr.mxu0 %v497
    %1663 = vmatpush1.msra.mxu0 %v496
    %1664 = vmatprep.subr.mxu0 %v501
    %1665 = vmatpush1.msra.mxu0 %v500
    %1666 = vmatprep.subr.mxu0 %v505
    %1667 = vmatpush1.msra.mxu0 %v504
    %1668 = vmatprep.subr.mxu0 %v509
    %1669 = vmatpush1.msra.mxu0 %v508
    %1670 = vmatprep.subr.mxu0 %v513
    %1671 = vmatpush1.msra.mxu0 %v512
    %1672 = vmatprep.subr.mxu0 %v517
    %1673 = vmatpush1.msra.mxu0 %v516
    %1674 = vmatprep.subr.mxu0 %v521
    %1675 = vmatpush1.msra.mxu0 %v520
    %1676 = vmatprep.subr.mxu0 %v525
    %1677 = vmatpush1.msra.mxu0 %v524
    %1678 = vmatprep.subr.mxu0 %v529
    %1679 = vmatpush1.msra.mxu0 %v528
    %1680 = vmatprep.subr.mxu0 0.0
    %1681 = vmatpush1.msra.mxu0 0.0
    %1682 = vmatprep.subr.mxu0 0.0
    %1683 = vmatpush1.msra.mxu0 0.0
    %1684 = vmatprep.subr.mxu0 0.0
    %1685 = vmatpush1.msra.mxu0 0.0
    %1686 = vmatprep.subr.mxu0 0.0
    %1687 = vmatpush1.msra.mxu0 0.0
    %1688 = vmatprep.subr.mxu0 0.0
    %1689 = vmatpush1.msra.mxu0 0.0
    %1690 = vmatprep.subr.mxu0 0.0
    %1691 = vmatpush1.msra.mxu0 0.0
    %1692 = vmatprep.subr.mxu0 0.0
    %1693 = vmatpush1.msra.mxu0 0.0
    %1694 = vmatprep.subr.mxu0 0.0
    %1695 = vmatpush1.msra.mxu0 0.0
    %1696 = vmatprep.subr.mxu0 0.0
    %1697 = vmatpush1.msra.mxu0 0.0
    %1698 = vmatprep.subr.mxu0 0.0
    %1699 = vmatpush1.msra.mxu0 0.0
    %1700 = vmatprep.subr.mxu0 0.0
    %1701 = vmatpush1.msra.mxu0 0.0
    %1702 = vmatprep.subr.mxu0 0.0
    %1703 = vmatpush1.msra.mxu0 0.0
    %1704 = vmatprep.subr.mxu0 0.0
    %1705 = vmatpush1.msra.mxu0 0.0
    %1706 = vmatprep.subr.mxu0 0.0
    %1707 = vmatpush1.msra.mxu0 0.0
    %1708 = vmatprep.subr.mxu0 0.0
    %1709 = vmatpush1.msra.mxu0 0.0
    %1710 = vmatprep.subr.mxu0 0.0
    %1711 = vmatpush1.msra.mxu0 0.0
    %1712 = vmatprep.mubr.f32.mxu0 0.0
    %1713 = vmatmul.mubr.f32.gmra.mrb[0].mxu0 %v1575
    %v1714 = vpop.f32.mrb[0].mxu0
    %v1715 = vadd.f32 0.0, %v1714
    %v1716 = vpop.f32.mrb[0].mxu0
    %v1717 = vadd.f32 0.0, %v1716
    %1718 = vdwg.mxu0
    %v1719 = vadd.f32 %v178, %v1644
    %v1720 = vadd.f32 %v180, %v1646
    %v1721 = vadd.f32 %v267, %v1715
    %v1722 = vadd.f32 %v269, %v1717
    %v1723 = vtanh.pop %v1719
    %v1724 = vtanh.pop %v1720
    %v1725 = vtanh.pop %v1721
    %v1726 = vtanh.pop %v1722
    %v1727 = vmul.f32 %v1723, 0.5
    %v1728 = vmul.f32 %v1724, 0.5
    %v1729 = vmul.f32 %v1725, 0.5
    %v1730 = vadd.f32 %v1727, 0.5
    %v1731 = vadd.f32 %v1728, 0.5
    %v1732 = vadd.f32 %v1729, 0.5
    %v1734 = vrot.slane %v1566, 4
    %v1736 = vmul.f32 %v1731, %v1734
    %v1737 = vmul.f32 %v1730, %v1726
    %v1738 = vadd.f32 %v1736, %v1737
    %v1739 = vtanh.pop %v1738
    %v1740 = vmul.f32 %v1732, %v1739
    %v1741 = vmul.f32 %v458, %v1740
    %v1742 = vadd.f32 %v1573, %v1741
    %1743 = vmatprep.subr.mxu0 %v467
    %1744 = vmatpush1.msra.mxu0 %v466
    %1745 = vmatprep.subr.mxu0 %v471
    %1746 = vmatpush1.msra.mxu0 %v470
    %1747 = vmatprep.subr.mxu0 %v475
    %1748 = vmatpush1.msra.mxu0 %v474
    %1749 = vmatprep.subr.mxu0 %v479
    %1750 = vmatpush1.msra.mxu0 %v478
    %1751 = vmatprep.subr.mxu0 %v483
    %1752 = vmatpush1.msra.mxu0 %v482
    %1753 = vmatprep.subr.mxu0 %v487
    %1754 = vmatpush1.msra.mxu0 %v486
    %1755 = vmatprep.subr.mxu0 %v491
    %1756 = vmatpush1.msra.mxu0 %v490
    %1757 = vmatprep.subr.mxu0 %v495
    %1758 = vmatpush1.msra.mxu0 %v494
    %1759 = vmatprep.subr.mxu0 %v499
    %1760 = vmatpush1.msra.mxu0 %v498
    %1761 = vmatprep.subr.mxu0 %v503
    %1762 = vmatpush1.msra.mxu0 %v502
    %1763 = vmatprep.subr.mxu0 %v507
    %1764 = vmatpush1.msra.mxu0 %v506
    %1765 = vmatprep.subr.mxu0 %v511
    %1766 = vmatpush1.msra.mxu0 %v510
    %1767 = vmatprep.subr.mxu0 %v515
    %1768 = vmatpush1.msra.mxu0 %v514
    %1769 = vmatprep.subr.mxu0 %v519
    %1770 = vmatpush1.msra.mxu0 %v518
    %1771 = vmatprep.subr.mxu0 %v523
    %1772 = vmatpush1.msra.mxu0 %v522
    %1773 = vmatprep.subr.mxu0 %v527
    %1774 = vmatpush1.msra.mxu0 %v526
    %1775 = vmatprep.subr.mxu0 0.0
    %1776 = vmatpush1.msra.mxu0 0.0
    %1777 = vmatprep.subr.mxu0 0.0
    %1778 = vmatpush1.msra.mxu0 0.0
    %1779 = vmatprep.subr.mxu0 0.0
    %1780 = vmatpush1.msra.mxu0 0.0
    %1781 = vmatprep.subr.mxu0 0.0
    %1782 = vmatpush1.msra.mxu0 0.0
    %1783 = vmatprep.subr.mxu0 0.0
    %1784 = vmatpush1.msra.mxu0 0.0
    %1785 = vmatprep.subr.mxu0 0.0
    %1786 = vmatpush1.msra.mxu0 0.0
    %1787 = vmatprep.subr.mxu0 0.0
    %1788 = vmatpush1.msra.mxu0 0.0
    %1789 = vmatprep.subr.mxu0 0.0
    %1790 = vmatpush1.msra.mxu0 0.0
    %1791 = vmatprep.subr.mxu0 0.0
    %1792 = vmatpush1.msra.mxu0 0.0
    %1793 = vmatprep.subr.mxu0 0.0
    %1794 = vmatpush1.msra.mxu0 0.0
    %1795 = vmatprep.subr.mxu0 0.0
    %1796 = vmatpush1.msra.mxu0 0.0
    %1797 = vmatprep.subr.mxu0 0.0
    %1798 = vmatpush1.msra.mxu0 0.0
    %1799 = vmatprep.subr.mxu0 0.0
    %1800 = vmatpush1.msra.mxu0 0.0
    %1801 = vmatprep.subr.mxu0 0.0
    %1802 = vmatpush1.msra.mxu0 0.0
    %1803 = vmatprep.subr.mxu0 0.0
    %1804 = vmatpush1.msra.mxu0 0.0
    %1805 = vmatprep.subr.mxu0 0.0
    %1806 = vmatpush1.msra.mxu0 0.0
    %1807 = vmatprep.mubr.f32.mxu0 0.0
    %1808 = vmatmul.mubr.f32.gmra.mrb[0].mxu0 %v1740
    %v1809 = vpop.f32.mrb[0].mxu0
    %v1810 = vadd.f32 0.0, %v1809
    %v1811 = vpop.f32.mrb[0].mxu0
    %v1812 = vadd.f32 0.0, %v1811
    %1813 = vdwg.mxu0
    %1814 = vmatprep.subr.mxu0 %v469
    %1815 = vmatpush1.msra.mxu0 %v468
    %1816 = vmatprep.subr.mxu0 %v473
    %1817 = vmatpush1.msra.mxu0 %v472
    %1818 = vmatprep.subr.mxu0 %v477
    %1819 = vmatpush1.msra.mxu0 %v476
    %1820 = vmatprep.subr.mxu0 %v481
    %1821 = vmatpush1.msra.mxu0 %v480
    %1822 = vmatprep.subr.mxu0 %v485
    %1823 = vmatpush1.msra.mxu0 %v484
    %1824 = vmatprep.subr.mxu0 %v489
    %1825 = vmatpush1.msra.mxu0 %v488
    %1826 = vmatprep.subr.mxu0 %v493
    %1827 = vmatpush1.msra.mxu0 %v492
    %1828 = vmatprep.subr.mxu0 %v497
    %1829 = vmatpush1.msra.mxu0 %v496
    %1830 = vmatprep.subr.mxu0 %v501
    %1831 = vmatpush1.msra.mxu0 %v500
    %1832 = vmatprep.subr.mxu0 %v505
    %1833 = vmatpush1.msra.mxu0 %v504
    %1834 = vmatprep.subr.mxu0 %v509
    %1835 = vmatpush1.msra.mxu0 %v508
    %1836 = vmatprep.subr.mxu0 %v513
    %1837 = vmatpush1.msra.mxu0 %v512
    %1838 = vmatprep.subr.mxu0 %v517
    %1839 = vmatpush1.msra.mxu0 %v516
    %1840 = vmatprep.subr.mxu0 %v521
    %1841 = vmatpush1.msra.mxu0 %v520
    %1842 = vmatprep.subr.mxu0 %v525
    %1843 = vmatpush1.msra.mxu0 %v524
    %1844 = vmatprep.subr.mxu0 %v529
    %1845 = vmatpush1.msra.mxu0 %v528
    %1846 = vmatprep.subr.mxu0 0.0
    %1847 = vmatpush1.msra.mxu0 0.0
    %1848 = vmatprep.subr.mxu0 0.0
    %1849 = vmatpush1.msra.mxu0 0.0
    %1850 = vmatprep.subr.mxu0 0.0
    %1851 = vmatpush1.msra.mxu0 0.0
    %1852 = vmatprep.subr.mxu0 0.0
    %1853 = vmatpush1.msra.mxu0 0.0
    %1854 = vmatprep.subr.mxu0 0.0
    %1855 = vmatpush1.msra.mxu0 0.0
    %1856 = vmatprep.subr.mxu0 0.0
    %1857 = vmatpush1.msra.mxu0 0.0
    %1858 = vmatprep.subr.mxu0 0.0
    %1859 = vmatpush1.msra.mxu0 0.0
    %1860 = vmatprep.subr.mxu0 0.0
    %1861 = vmatpush1.msra.mxu0 0.0
    %1862 = vmatprep.subr.mxu0 0.0
    %1863 = vmatpush1.msra.mxu0 0.0
    %1864 = vmatprep.subr.mxu0 0.0
    %1865 = vmatpush1.msra.mxu0 0.0
    %1866 = vmatprep.subr.mxu0 0.0
    %1867 = vmatpush1.msra.mxu0 0.0
    %1868 = vmatprep.subr.mxu0 0.0
    %1869 = vmatpush1.msra.mxu0 0.0
    %1870 = vmatprep.subr.mxu0 0.0
    %1871 = vmatpush1.msra.mxu0 0.0
    %1872 = vmatprep.subr.mxu0 0.0
    %1873 = vmatpush1.msra.mxu0 0.0
    %1874 = vmatprep.subr.mxu0 0.0
    %1875 = vmatpush1.msra.mxu0 0.0
    %1876 = vmatprep.subr.mxu0 0.0
    %1877 = vmatpush1.msra.mxu0 0.0
    %1878 = vmatprep.mubr.f32.mxu0 0.0
    %1879 = vmatmul.mubr.f32.gmra.mrb[0].mxu0 %v1740
    %v1880 = vpop.f32.mrb[0].mxu0
    %v1881 = vadd.f32 0.0, %v1880
    %v1882 = vpop.f32.mrb[0].mxu0
    %v1883 = vadd.f32 0.0, %v1882
    %1884 = vdwg.mxu0
    %v1889 = vrot.slane %v1810, 4
    %v1890 = vrot.slane %v1812, 4
    %v1891 = vrot.slane %v1881, 4
    %v1892 = vrot.slane %v1883, 4
    %v1897 = vadd.f32 %v178, %v1889
    %v1898 = vadd.f32 %v180, %v1890
    %v1899 = vadd.f32 %v267, %v1891
    %v1900 = vadd.f32 %v269, %v1892
    %v1901 = vtanh.pop %v1897
    %v1902 = vtanh.pop %v1898
    %v1903 = vtanh.pop %v1899
    %v1904 = vtanh.pop %v1900
    %v1905 = vmul.f32 %v1901, 0.5
    %v1906 = vmul.f32 %v1902, 0.5
    %v1907 = vmul.f32 %v1903, 0.5
    %v1908 = vadd.f32 %v1905, 0.5
    %v1909 = vadd.f32 %v1906, 0.5
    %v1910 = vadd.f32 %v1907, 0.5
    %v1912 = vrot.slane %v1738, 4
    %v1914 = vmul.f32 %v1909, %v1912
    %v1915 = vmul.f32 %v1908, %v1904
    %v1916 = vadd.f32 %v1914, %v1915
    %v1917 = vtanh.pop %v1916
    %v1918 = vmul.f32 %v1910, %v1917
    %v1919 = vmul.f32 %v464, %v1918
    %v1921 = vrot.slane %v1919, 4
    %v1923 = vadd.f32 %v1742, %v1921
    %v1924 = vld [vmem:[%s4] sm:$0xff]
    %v1925 = vld [vmem:[%s4 + $0x8] sm:$0xff]
    %v1926 = vld [vmem:[%s4 + $0x10] sm:$0xff]
    %v1927 = vld [vmem:[%s4 + $0x18] sm:$0xff]
    %v1928 = vld [vmem:[%s4 + $0x20] sm:$0xff]
    %v1929 = vld [vmem:[%s4 + $0x28] sm:$0xff]
    %v1930 = vld [vmem:[%s4 + $0x30] sm:$0xff]
    %v1931 = vld [vmem:[%s4 + $0x38] sm:$0xff]
    %v1932 = vld [vmem:[%s4 + $0x40] sm:$0xff]
    %v1933 = vld [vmem:[%s4 + $0x48] sm:$0xff]
    %v1934 = vld [vmem:[%s4 + $0x50] sm:$0xff]
    %v1935 = vld [vmem:[%s4 + $0x58] sm:$0xff]
    %v1936 = vld [vmem:[%s4 + $0x60] sm:$0xff]
    %v1937 = vld [vmem:[%s4 + $0x68] sm:$0xff]
    %v1938 = vld [vmem:[%s4 + $0x70] sm:$0xff]
    %v1939 = vld [vmem:[%s4 + $0x78] sm:$0xff]
    %1940 = vmatprep.subr.mxu0 0.0
    %1941 = vmatpush1.msra.mxu0 %v1924
    %1942 = vmatprep.subr.mxu0 0.0
    %1943 = vmatpush1.msra.mxu0 %v1925
    %1944 = vmatprep.subr.mxu0 0.0
    %1945 = vmatpush1.msra.mxu0 %v1926
    %1946 = vmatprep.subr.mxu0 0.0
    %1947 = vmatpush1.msra.mxu0 %v1927
    %1948 = vmatprep.subr.mxu0 0.0
    %1949 = vmatpush1.msra.mxu0 %v1928
    %1950 = vmatprep.subr.mxu0 0.0
    %1951 = vmatpush1.msra.mxu0 %v1929
    %1952 = vmatprep.subr.mxu0 0.0
    %1953 = vmatpush1.msra.mxu0 %v1930
    %1954 = vmatprep.subr.mxu0 0.0
    %1955 = vmatpush1.msra.mxu0 %v1931
    %1956 = vmatprep.subr.mxu0 0.0
    %1957 = vmatpush1.msra.mxu0 %v1932
    %1958 = vmatprep.subr.mxu0 0.0
    %1959 = vmatpush1.msra.mxu0 %v1933
    %1960 = vmatprep.subr.mxu0 0.0
    %1961 = vmatpush1.msra.mxu0 %v1934
    %1962 = vmatprep.subr.mxu0 0.0
    %1963 = vmatpush1.msra.mxu0 %v1935
    %1964 = vmatprep.subr.mxu0 0.0
    %1965 = vmatpush1.msra.mxu0 %v1936
    %1966 = vmatprep.subr.mxu0 0.0
    %1967 = vmatpush1.msra.mxu0 %v1937
    %1968 = vmatprep.subr.mxu0 0.0
    %1969 = vmatpush1.msra.mxu0 %v1938
    %1970 = vmatprep.subr.mxu0 0.0
    %1971 = vmatpush1.msra.mxu0 %v1939
    %1972 = vmatprep.subr.mxu0 0.0
    %1973 = vmatpush1.msra.mxu0 0.0
    %1974 = vmatprep.subr.mxu0 0.0
    %1975 = vmatpush1.msra.mxu0 0.0
    %1976 = vmatprep.subr.mxu0 0.0
    %1977 = vmatpush1.msra.mxu0 0.0
    %1978 = vmatprep.subr.mxu0 0.0
    %1979 = vmatpush1.msra.mxu0 0.0
    %1980 = vmatprep.subr.mxu0 0.0
    %1981 = vmatpush1.msra.mxu0 0.0
    %1982 = vmatprep.subr.mxu0 0.0
    %1983 = vmatpush1.msra.mxu0 0.0
    %1984 = vmatprep.subr.mxu0 0.0
    %1985 = vmatpush1.msra.mxu0 0.0
    %1986 = vmatprep.subr.mxu0 0.0
    %1987 = vmatpush1.msra.mxu0 0.0
    %1988 = vmatprep.subr.mxu0 0.0
    %1989 = vmatpush1.msra.mxu0 0.0
    %1990 = vmatprep.subr.mxu0 0.0
    %1991 = vmatpush1.msra.mxu0 0.0
    %1992 = vmatprep.subr.mxu0 0.0
    %1993 = vmatpush1.msra.mxu0 0.0
    %1994 = vmatprep.subr.mxu0 0.0
    %1995 = vmatpush1.msra.mxu0 0.0
    %1996 = vmatprep.subr.mxu0 0.0
    %1997 = vmatpush1.msra.mxu0 0.0
    %1998 = vmatprep.subr.mxu0 0.0
    %1999 = vmatpush1.msra.mxu0 0.0
    %2000 = vmatprep.subr.mxu0 0.0
    %2001 = vmatpush1.msra.mxu0 0.0
    %2002 = vmatprep.subr.mxu0 0.0
    %2003 = vmatpush1.msra.mxu0 0.0
    %2004 = vmatprep.mubr.f32.mxu0 0.0
    %2005 = vmatmul.mubr.f32.gmra.mrb[0].mxu0 %v1923
    %v2006 = vpop.f32.mrb[0].mxu0
    %v2007 = vadd.f32 0.0, %v2006
    %v2008 = vpop.f32.mrb[0].mxu0
    %2009 = vdwg.mxu0
    %v2010 = vld [vmem:[%s5] sm:$0x3]
    %vm2011 = vcmp.ge.s32.totalorder %v272, 2
    %v2012 = vlaneseq
    %v2013 = vshrl.u32 %v2012, 7
    %v2014 = vsub.s32 1, %v2013
    %v2015 = vrot.slane %v2010, %v2014
    %2017 = vrot.lane.b32.xlu0 %v2015, 4
    %v2018 = vpop.permute.xlu0 %2017
    %v2020 = vadd.f32 %v2007, %v2018
    %v2021 = vlaneseq
    %v2022 = vshrl.u32 %v2021, 7
    %v2023 = vsub.s32 0, %v2022
    %v2024 = vrot.slane %v2010, %v2023
    %v2025 = vadd.f32 %v2007, %v2024
    %2027 = vrot.lane.b32.xlu0 %v2025, 4
    %v2028 = vpop.permute.xlu0 %2027
    %v2030 = vsel %vm2011, %v2020, %v2028
    %2032 = vrot.lane.b32.xlu0 %v2030, 124
    %v2033 = vpop.permute.xlu0 %2032
    %vm2035 = vcmask 27648
    %2036 = vst.msk [vmem:[#allocation5] sm:$0xf] %vm2035, %v2033
    // Predicated region
    $region30: #{_forward_impl.1} parent=1 // pred_check
      _
    $region31: #{_forward_impl.1} parent=1 // pred_check_branch
      %2038 = sbr.rel (0) target = $region33
    $region32: #{_forward_impl.1} parent=1 // pred_region
      %s2040 = ssub.s32 64, 64
      %2041 = vsyncadd [#allocation4], %s2040
      %s2043 = sshll.u32 [#allocation5], 4
      %s2044 = int_to_ptr.vmem [resolvable:$true] %s2043
      %2046 = dma.vmem_to_hbm [thread:$0]  %s2044, 64, %s6, [#allocation4]
    $region33: #{_forward_impl.1} parent=1 // pred_fallthru
      _
    // Predicated region
    $region34: #{_forward_impl.1} parent=1 // pred_check
      _
    $region35: #{_forward_impl.1} parent=1 // pred_check_branch
      %2048 = sbr.rel (0) target = $region37
    $region36: #{_forward_impl.1} parent=1 // pred_region
      %2049 = dma.done [#allocation4], 64
    $region37: #{_forward_impl.1} parent=1 // pred_fallthru
      _
    %2050 = vsyncpa [#allocation3], 1
    %2051 = vsyncpa [#allocation4], 1

</llo_original>
